<compile_context>
chip_gen: v6e
topology: v6e:2x2x1
jax: 0.10.0
libtpu: 0.0.40
codegen_flags: <defaults>
</compile_context>

<pallas_src>
import functools

import jax
import jax.numpy as jnp
from jax.experimental import pallas as pl
from jax.experimental.pallas import tpu as pltpu


def self_attention_kernel(x_ref, w_t_ref, w_gp_ref, w_attn_ref, sigma_ref, o_ref,
                          *, dg):
    bt, C, HW = x_ref.shape
    q = HW // 4
    sigma = sigma_ref[0, 0]

    w_t = w_t_ref[...]        # (dt, C)       bf16 (theta weight, pre-transposed)
    w_gp = w_gp_ref[...]      # (dg + dp, C)  bf16 ([g | phi] weight, pre-transposed)
    w_attn = w_attn_ref[...]  # (dg, C)       bf16

    # bt is tiny (<= 2 typically): static unroll; each iteration is plain 2-D
    # MXU dots in guaranteed-supported (plain / trans_a / trans_b) forms.
    for b in range(bt):
        xb = x_ref[b].astype(jnp.bfloat16)                              # (C, HW)

        # 1x1 convs, channels-first so HW stays on the lane axis.
        theta = jnp.dot(w_t, xb, preferred_element_type=jnp.float32)    # (dt, HW)
        y_gp = jnp.dot(w_gp, xb, preferred_element_type=jnp.float32)    # (dg+dp, HW)

        # 2x2 max-pool: columns are pool-permuted (r = k*q + p), so the 4 members
        # of every 2x2 block are an elementwise max over 4 lane groups of size q.
        pooled = jnp.maximum(
            jnp.maximum(y_gp[:, 0 * q:1 * q], y_gp[:, 1 * q:2 * q]),
            jnp.maximum(y_gp[:, 2 * q:3 * q], y_gp[:, 3 * q:4 * q]))    # (dg+dp, q)
        g = pooled[:dg, :].astype(jnp.bfloat16)        # (dg, q)  rows 0..dg-1 (8-aligned)
        phi = pooled[dg:, :].astype(jnp.bfloat16)      # (dp, q)  rows dg..     (8-aligned)

        # Fold the final 1x1 conv into g:  g'_T = w_attn^T @ g  -> (C, q).
        g_prime_T = jax.lax.dot_general(
            w_attn, g, (((0,), (0,)), ((), ())),
            preferred_element_type=jnp.float32).astype(jnp.bfloat16)    # (C, q)

        # Attention logits (HW, q): contract the tiny channel dim (trans_a form).
        s = jax.lax.dot_general(
            theta.astype(jnp.bfloat16), phi, (((0,), (0,)), ((), ())),
            preferred_element_type=jnp.float32)                         # (HW, q)

        # Softmax over the pooled axis in f32; exact divide for torch parity.
        s = s - jnp.max(s, axis=-1, keepdims=True)
        p = jnp.exp(s)
        attn = (p / jnp.sum(p, axis=-1, keepdims=True)).astype(jnp.bfloat16)  # (HW, q)

        # out_T (C, HW) = g'_T @ attn^T : contract q (minor dim of both operands).
        out_T = jax.lax.dot_general(
            g_prime_T, attn, (((1,), (1,)), ((), ())),
            preferred_element_type=jnp.float32)                         # (C, HW)

        # Residual add: re-read x_ref here (no f32 copy held live across the body);
        # lane-dense (256-lane) store.
        o_ref[b] = (x_ref[b] + sigma * out_T).astype(o_ref.dtype)


def _auto_batch_tile(B):
    """Single grid step on single-TC chips; split the batch on multi-core chips."""
    kind = ""
    try:
        kind = jax.devices()[0].device_kind.lower()
    except Exception:
        pass
    multi_core = any(tag in kind for tag in ("v7", "v4", "v5p"))
    if multi_core and B >= 2 and B % 2 == 0:
        return B // 2
    return B


def self_attention(x_nchw, w_theta, w_phi, w_g, w_attn, sigma, *, batch_tile=None):
    """x_nchw: (B, C, H, W); conv weights are (C_in, C_out) (= torch w[:, :, 0, 0].T)."""
    B, C, H, W = x_nchw.shape
    HW = H * W
    assert H % 2 == 0 and W % 2 == 0 and C % 8 == 0
    dt, dp, dg = C // 8, C // 8, C // 2

    bt = _auto_batch_tile(B) if batch_tile is None else batch_tile
    assert B % bt == 0

    # Single pool-permuted, channels-first (lane-dense) copy of x shipped to the
    # kernel: column r = (2*kh + kw) * (HW/4) + (h2*(W/2) + w2).
    x_perm = (x_nchw.reshape(B, C, H // 2, 2, W // 2, 2)
              .transpose(0, 1, 3, 5, 2, 4)
              .reshape(B, C, HW))

    # Pre-transposed bf16 conv weights (f32 accumulation happens in-kernel).
    w_t_T = jnp.asarray(w_theta, jnp.bfloat16).T                             # (dt, C)
    w_gp_T = jnp.concatenate([w_g, w_phi], axis=1).astype(jnp.bfloat16).T    # (dg+dp, C)
    w_attn_bf = jnp.asarray(w_attn, jnp.bfloat16)                            # (dg, C)
    sigma2d = jnp.asarray(sigma, jnp.float32).reshape(1, 1)

    kernel = functools.partial(self_attention_kernel, dg=dg)

    out_perm = pl.pallas_call(
        kernel,
        out_shape=jax.ShapeDtypeStruct((B, C, HW), x_nchw.dtype),
        grid_spec=pltpu.PrefetchScalarGridSpec(
            num_scalar_prefetch=0,
            grid=(B // bt,),
            in_specs=[
                pl.BlockSpec((bt, C, HW), lambda b: (b, 0, 0)),
                pl.BlockSpec(w_t_T.shape, lambda b: (0, 0)),
                pl.BlockSpec(w_gp_T.shape, lambda b: (0, 0)),
                pl.BlockSpec(w_attn_bf.shape, lambda b: (0, 0)),
                pl.BlockSpec(memory_space=pltpu.MemorySpace.SMEM),  # sigma scalar
            ],
            out_specs=pl.BlockSpec((bt, C, HW), lambda b: (b, 0, 0)),
        ),
        compiler_params=pltpu.CompilerParams(
            dimension_semantics=("parallel",),
            vmem_limit_bytes=32 * 1024 * 1024,
        ),
    )(x_perm, w_t_T, w_gp_T, w_attn_bf, sigma2d)

    # Undo the pool permutation back to NCHW (single fused transpose each way;
    # the tensor is tiny at these sizes).
    out = (out_perm.reshape(B, C, 2, 2, H // 2, W // 2)
           .transpose(0, 1, 4, 2, 5, 3)
           .reshape(B, C, H, W))
    return out


def reference(x, w_theta, w_phi, w_g, w_attn, sigma):
    """Pure-JAX mirror of the PyTorch forward (NCHW), f32, high precision."""
    B, C, H, W = x.shape
    hp = jax.lax.Precision.HIGHEST

    def conv1x1(inp, w):  # w: (C_in, C_out)
        return jnp.einsum('bchw,cd->bdhw', inp, w, precision=hp)

    def maxpool2(inp):
        b, d, h, w = inp.shape
        return inp.reshape(b, d, h // 2, 2, w // 2, 2).max(axis=(3, 5))

    theta = conv1x1(x, w_theta).reshape(B, C // 8, H * W)
    phi = maxpool2(conv1x1(x, w_phi)).reshape(B, C // 8, H * W // 4)
    attn = jax.nn.softmax(
        jnp.einsum('bci,bcj->bij', theta, phi, precision=hp), axis=-1)
    g = maxpool2(conv1x1(x, w_g)).reshape(B, C // 2, H * W // 4)
    attn_g = jnp.einsum('bcj,bij->bci', g, attn, precision=hp)
    attn_g = attn_g.reshape(B, C // 2, H, W)
    out_attn = conv1x1(attn_g, w_attn)
    return x + sigma * out_attn


if __name__ == "__main__":
    B, C, H, W = 2, 32, 16, 16  # in_channels must be divisible by 8

    key = jax.random.PRNGKey(0)
    k_x, k_t, k_p, k_g, k_a = jax.random.split(key, 5)

    x = jax.random.normal(k_x, (B, C, H, W), dtype=jnp.float32)
    # deterministic synthetic weights, (C_in, C_out) layout
    w_theta = 0.1 * jax.random.normal(k_t, (C, C // 8), dtype=jnp.float32)
    w_phi   = 0.1 * jax.random.normal(k_p, (C, C // 8), dtype=jnp.float32)
    w_g     = 0.1 * jax.random.normal(k_g, (C, C // 2), dtype=jnp.float32)
    w_attn  = 0.1 * jax.random.normal(k_a, (C // 2, C), dtype=jnp.float32)
    # module __init__ sets sigma = 0 (output would trivially equal x);
    # use a nonzero value so the attention path is actually exercised.
    sigma = jnp.float32(0.5)

    out = self_attention(x, w_theta, w_phi, w_g, w_attn, sigma)
    out = jax.block_until_ready(out)

    ref = reference(x, w_theta, w_phi, w_g, w_attn, sigma)
    assert out.shape == (B, C, H, W)
    # bf16 MXU operands (f32 accumulation) -> slightly looser tolerance than pure f32
    assert jnp.allclose(out, ref, atol=2e-2, rtol=2e-2), (
        float(jnp.max(jnp.abs(out - ref))))

    print("KERNEL_OK")
</pallas_src>

<mosaic_0001>
module attributes {stable_mosaic.version = 11 : i64} {
  func.func @self_attention_kernel(%arg0: i32, %arg1: memref<2x32x256xf32, #tpu.memory_space<vmem>>, %arg2: memref<4x32xbf16, #tpu.memory_space<vmem>>, %arg3: memref<20x32xbf16, #tpu.memory_space<vmem>>, %arg4: memref<16x32xbf16, #tpu.memory_space<vmem>>, %arg5: memref<1x1xf32, #tpu.memory_space<smem>>, %arg6: memref<2x32x256xf32, #tpu.memory_space<vmem>>) attributes {dimension_semantics = [#tpu.dimension_semantics<parallel>], iteration_bounds = array<i64: 1>, scalar_prefetch = 0 : i64, scratch_operands = 0 : i64, tpu.core_type = #tpu.core_type<tc>, window_params = [{transform_indices = @transform_0, window_bounds = array<i64: 2, 32, 256>}, {pipeline_mode = #tpu.pipeline_mode<synchronous>, transform_indices = @transform_1, window_bounds = array<i64: 4, 32>}, {pipeline_mode = #tpu.pipeline_mode<synchronous>, transform_indices = @transform_2, window_bounds = array<i64: 20, 32>}, {pipeline_mode = #tpu.pipeline_mode<synchronous>, transform_indices = @transform_3, window_bounds = array<i64: 16, 32>}, {transform_indices = @transform_4, window_bounds = array<i64: 1, 1>}, {transform_indices = @transform_5, window_bounds = array<i64: 2, 32, 256>}]} {
    %c0 = arith.constant 0 : index
    %c0_0 = arith.constant 0 : index
    %0 = memref.load %arg5[%c0, %c0_0] : memref<1x1xf32, #tpu.memory_space<smem>>
    %c0_1 = arith.constant 0 : index
    %c0_2 = arith.constant 0 : index
    %1 = vector.load %arg2[%c0_1, %c0_2] : memref<4x32xbf16, #tpu.memory_space<vmem>>, vector<4x32xbf16>
    %c0_3 = arith.constant 0 : index
    %c0_4 = arith.constant 0 : index
    %2 = vector.load %arg3[%c0_3, %c0_4] : memref<20x32xbf16, #tpu.memory_space<vmem>>, vector<20x32xbf16>
    %c0_5 = arith.constant 0 : index
    %c0_6 = arith.constant 0 : index
    %3 = vector.load %arg4[%c0_5, %c0_6] : memref<16x32xbf16, #tpu.memory_space<vmem>>, vector<16x32xbf16>
    %c0_7 = arith.constant 0 : index
    %c0_8 = arith.constant 0 : index
    %c0_9 = arith.constant 0 : index
    %4 = vector.load %arg1[%c0_7, %c0_8, %c0_9] : memref<2x32x256xf32, #tpu.memory_space<vmem>>, vector<1x32x256xf32>
    %5 = vector.shape_cast %4 : vector<1x32x256xf32> to vector<32x256xf32>
    %6 = arith.truncf %5 : vector<32x256xf32> to vector<32x256xbf16>
    %cst = arith.constant dense<0.000000e+00> : vector<4x256xf32>
    %7 = tpu.matmul %1, %6, %cst {dimension_numbers = #tpu.dot_dimension_numbers<[1], [0], [0], [1], [0, 0, 1, 1], [], []>} : vector<4x32xbf16>, vector<32x256xbf16>, vector<4x256xf32> -> vector<4x256xf32>
    %cst_10 = arith.constant dense<0.000000e+00> : vector<20x256xf32>
    %8 = tpu.matmul %2, %6, %cst_10 {dimension_numbers = #tpu.dot_dimension_numbers<[1], [0], [0], [1], [0, 0, 1, 1], [], []>} : vector<20x32xbf16>, vector<32x256xbf16>, vector<20x256xf32> -> vector<20x256xf32>
    %9 = vector.extract_strided_slice %8 {offsets = [0, 0], sizes = [20, 64], strides = [1, 1]} : vector<20x256xf32> to vector<20x64xf32>
    %10 = vector.extract_strided_slice %8 {offsets = [0, 64], sizes = [20, 64], strides = [1, 1]} : vector<20x256xf32> to vector<20x64xf32>
    %11 = arith.maximumf %9, %10 : vector<20x64xf32>
    %12 = vector.extract_strided_slice %8 {offsets = [0, 128], sizes = [20, 64], strides = [1, 1]} : vector<20x256xf32> to vector<20x64xf32>
    %13 = vector.extract_strided_slice %8 {offsets = [0, 192], sizes = [20, 64], strides = [1, 1]} : vector<20x256xf32> to vector<20x64xf32>
    %14 = arith.maximumf %12, %13 : vector<20x64xf32>
    %15 = arith.maximumf %11, %14 : vector<20x64xf32>
    %16 = vector.extract_strided_slice %15 {offsets = [0, 0], sizes = [16, 64], strides = [1, 1]} : vector<20x64xf32> to vector<16x64xf32>
    %17 = arith.truncf %16 : vector<16x64xf32> to vector<16x64xbf16>
    %18 = vector.extract_strided_slice %15 {offsets = [16, 0], sizes = [4, 64], strides = [1, 1]} : vector<20x64xf32> to vector<4x64xf32>
    %19 = arith.truncf %18 : vector<4x64xf32> to vector<4x64xbf16>
    %cst_11 = arith.constant dense<0.000000e+00> : vector<32x64xf32>
    %20 = tpu.matmul %3, %17, %cst_11 {dimension_numbers = #tpu.dot_dimension_numbers<[0], [0], [1], [1], [0, 1, 1, 1], [], []>} : vector<16x32xbf16>, vector<16x64xbf16>, vector<32x64xf32> -> vector<32x64xf32>
    %21 = arith.truncf %20 : vector<32x64xf32> to vector<32x64xbf16>
    %22 = arith.truncf %7 : vector<4x256xf32> to vector<4x256xbf16>
    %cst_12 = arith.constant dense<0.000000e+00> : vector<256x64xf32>
    %23 = tpu.matmul %22, %19, %cst_12 {dimension_numbers = #tpu.dot_dimension_numbers<[0], [0], [1], [1], [0, 1, 1, 1], [], []>} : vector<4x256xbf16>, vector<4x64xbf16>, vector<256x64xf32> -> vector<256x64xf32>
    %cst_13 = arith.constant dense<0xFF800000> : vector<256xf32>
    %24 = vector.multi_reduction <maximumf>, %23, %cst_13 [1] : vector<256x64xf32> to vector<256xf32>
    %25 = vector.shape_cast %24 : vector<256xf32> to vector<256x1xf32>
    %26 = vector.broadcast %25 : vector<256x1xf32> to vector<256x64xf32>
    %27 = arith.subf %23, %26 : vector<256x64xf32>
    %28 = math.exp %27 : vector<256x64xf32>
    %cst_14 = arith.constant dense<0.000000e+00> : vector<256xf32>
    %29 = vector.multi_reduction <add>, %28, %cst_14 [1] : vector<256x64xf32> to vector<256xf32>
    %30 = vector.shape_cast %29 : vector<256xf32> to vector<256x1xf32>
    %31 = vector.broadcast %30 : vector<256x1xf32> to vector<256x64xf32>
    %32 = arith.divf %28, %31 : vector<256x64xf32>
    %33 = arith.truncf %32 : vector<256x64xf32> to vector<256x64xbf16>
    %cst_15 = arith.constant dense<0.000000e+00> : vector<32x256xf32>
    %34 = tpu.matmul %21, %33, %cst_15 {dimension_numbers = #tpu.dot_dimension_numbers<[1], [1], [0], [0], [0, 0, 1, 0], [], []>} : vector<32x64xbf16>, vector<256x64xbf16>, vector<32x256xf32> -> vector<32x256xf32>
    %c0_16 = arith.constant 0 : index
    %c0_17 = arith.constant 0 : index
    %c0_18 = arith.constant 0 : index
    %35 = vector.load %arg1[%c0_16, %c0_17, %c0_18] : memref<2x32x256xf32, #tpu.memory_space<vmem>>, vector<1x32x256xf32>
    %36 = vector.shape_cast %35 : vector<1x32x256xf32> to vector<32x256xf32>
    %37 = vector.broadcast %0 : f32 to vector<32x256xf32>
    %38 = arith.mulf %37, %34 : vector<32x256xf32>
    %39 = arith.addf %36, %38 : vector<32x256xf32>
    %c0_19 = arith.constant 0 : index
    %c0_20 = arith.constant 0 : index
    %c0_21 = arith.constant 0 : index
    %40 = vector.load %arg6[%c0_19, %c0_20, %c0_21] : memref<2x32x256xf32, #tpu.memory_space<vmem>>, vector<1x32x256xf32>
    %41 = vector.shape_cast %40 : vector<1x32x256xf32> to vector<32x256xf32>
    %42 = vector.shape_cast %39 : vector<32x256xf32> to vector<1x32x256xf32>
    tpu.vector_store %arg6[%c0_19, %c0_20, %c0_21], %42 {strides = array<i32>} : memref<2x32x256xf32, #tpu.memory_space<vmem>>, vector<1x32x256xf32>,
    %c1 = arith.constant 1 : index
    %c0_22 = arith.constant 0 : index
    %c0_23 = arith.constant 0 : index
    %43 = vector.load %arg1[%c1, %c0_22, %c0_23] : memref<2x32x256xf32, #tpu.memory_space<vmem>>, vector<1x32x256xf32>
    %44 = vector.shape_cast %43 : vector<1x32x256xf32> to vector<32x256xf32>
    %45 = arith.truncf %44 : vector<32x256xf32> to vector<32x256xbf16>
    %cst_24 = arith.constant dense<0.000000e+00> : vector<4x256xf32>
    %46 = tpu.matmul %1, %45, %cst_24 {dimension_numbers = #tpu.dot_dimension_numbers<[1], [0], [0], [1], [0, 0, 1, 1], [], []>} : vector<4x32xbf16>, vector<32x256xbf16>, vector<4x256xf32> -> vector<4x256xf32>
    %cst_25 = arith.constant dense<0.000000e+00> : vector<20x256xf32>
    %47 = tpu.matmul %2, %45, %cst_25 {dimension_numbers = #tpu.dot_dimension_numbers<[1], [0], [0], [1], [0, 0, 1, 1], [], []>} : vector<20x32xbf16>, vector<32x256xbf16>, vector<20x256xf32> -> vector<20x256xf32>
    %48 = vector.extract_strided_slice %47 {offsets = [0, 0], sizes = [20, 64], strides = [1, 1]} : vector<20x256xf32> to vector<20x64xf32>
    %49 = vector.extract_strided_slice %47 {offsets = [0, 64], sizes = [20, 64], strides = [1, 1]} : vector<20x256xf32> to vector<20x64xf32>
    %50 = arith.maximumf %48, %49 : vector<20x64xf32>
    %51 = vector.extract_strided_slice %47 {offsets = [0, 128], sizes = [20, 64], strides = [1, 1]} : vector<20x256xf32> to vector<20x64xf32>
    %52 = vector.extract_strided_slice %47 {offsets = [0, 192], sizes = [20, 64], strides = [1, 1]} : vector<20x256xf32> to vector<20x64xf32>
    %53 = arith.maximumf %51, %52 : vector<20x64xf32>
    %54 = arith.maximumf %50, %53 : vector<20x64xf32>
    %55 = vector.extract_strided_slice %54 {offsets = [0, 0], sizes = [16, 64], strides = [1, 1]} : vector<20x64xf32> to vector<16x64xf32>
    %56 = arith.truncf %55 : vector<16x64xf32> to vector<16x64xbf16>
    %57 = vector.extract_strided_slice %54 {offsets = [16, 0], sizes = [4, 64], strides = [1, 1]} : vector<20x64xf32> to vector<4x64xf32>
    %58 = arith.truncf %57 : vector<4x64xf32> to vector<4x64xbf16>
    %cst_26 = arith.constant dense<0.000000e+00> : vector<32x64xf32>
    %59 = tpu.matmul %3, %56, %cst_26 {dimension_numbers = #tpu.dot_dimension_numbers<[0], [0], [1], [1], [0, 1, 1, 1], [], []>} : vector<16x32xbf16>, vector<16x64xbf16>, vector<32x64xf32> -> vector<32x64xf32>
    %60 = arith.truncf %59 : vector<32x64xf32> to vector<32x64xbf16>
    %61 = arith.truncf %46 : vector<4x256xf32> to vector<4x256xbf16>
    %cst_27 = arith.constant dense<0.000000e+00> : vector<256x64xf32>
    %62 = tpu.matmul %61, %58, %cst_27 {dimension_numbers = #tpu.dot_dimension_numbers<[0], [0], [1], [1], [0, 1, 1, 1], [], []>} : vector<4x256xbf16>, vector<4x64xbf16>, vector<256x64xf32> -> vector<256x64xf32>
    %cst_28 = arith.constant dense<0xFF800000> : vector<256xf32>
    %63 = vector.multi_reduction <maximumf>, %62, %cst_28 [1] : vector<256x64xf32> to vector<256xf32>
    %64 = vector.shape_cast %63 : vector<256xf32> to vector<256x1xf32>
    %65 = vector.broadcast %64 : vector<256x1xf32> to vector<256x64xf32>
    %66 = arith.subf %62, %65 : vector<256x64xf32>
    %67 = math.exp %66 : vector<256x64xf32>
    %cst_29 = arith.constant dense<0.000000e+00> : vector<256xf32>
    %68 = vector.multi_reduction <add>, %67, %cst_29 [1] : vector<256x64xf32> to vector<256xf32>
    %69 = vector.shape_cast %68 : vector<256xf32> to vector<256x1xf32>
    %70 = vector.broadcast %69 : vector<256x1xf32> to vector<256x64xf32>
    %71 = arith.divf %67, %70 : vector<256x64xf32>
    %72 = arith.truncf %71 : vector<256x64xf32> to vector<256x64xbf16>
    %cst_30 = arith.constant dense<0.000000e+00> : vector<32x256xf32>
    %73 = tpu.matmul %60, %72, %cst_30 {dimension_numbers = #tpu.dot_dimension_numbers<[1], [1], [0], [0], [0, 0, 1, 0], [], []>} : vector<32x64xbf16>, vector<256x64xbf16>, vector<32x256xf32> -> vector<32x256xf32>
    %c1_31 = arith.constant 1 : index
    %c0_32 = arith.constant 0 : index
    %c0_33 = arith.constant 0 : index
    %74 = vector.load %arg1[%c1_31, %c0_32, %c0_33] : memref<2x32x256xf32, #tpu.memory_space<vmem>>, vector<1x32x256xf32>
    %75 = vector.shape_cast %74 : vector<1x32x256xf32> to vector<32x256xf32>
    %76 = vector.broadcast %0 : f32 to vector<32x256xf32>
    %77 = arith.mulf %76, %73 : vector<32x256xf32>
    %78 = arith.addf %75, %77 : vector<32x256xf32>
    %c1_34 = arith.constant 1 : index
    %c0_35 = arith.constant 0 : index
    %c0_36 = arith.constant 0 : index
    %79 = vector.load %arg6[%c1_34, %c0_35, %c0_36] : memref<2x32x256xf32, #tpu.memory_space<vmem>>, vector<1x32x256xf32>
    %80 = vector.shape_cast %79 : vector<1x32x256xf32> to vector<32x256xf32>
    %81 = vector.shape_cast %78 : vector<32x256xf32> to vector<1x32x256xf32>
    tpu.vector_store %arg6[%c1_34, %c0_35, %c0_36], %81 {strides = array<i32>} : memref<2x32x256xf32, #tpu.memory_space<vmem>>, vector<1x32x256xf32>,
    return
  }
  func.func @transform_0(%arg0: i32) -> (i32, i32, i32) {
    %c0_i32 = arith.constant 0 : i32
    %c0_i32_0 = arith.constant 0 : i32
    %c0_i32_1 = arith.constant 0 : i32
    return %arg0, %c0_i32, %c0_i32_0 : i32, i32, i32
  }
  func.func @transform_1(%arg0: i32) -> (i32, i32) {
    %c0_i32 = arith.constant 0 : i32
    %c0_i32_0 = arith.constant 0 : i32
    %c0_i32_1 = arith.constant 0 : i32
    return %c0_i32, %c0_i32_0 : i32, i32
  }
  func.func @transform_2(%arg0: i32) -> (i32, i32) {
    %c0_i32 = arith.constant 0 : i32
    %c0_i32_0 = arith.constant 0 : i32
    %c0_i32_1 = arith.constant 0 : i32
    return %c0_i32, %c0_i32_0 : i32, i32
  }
  func.func @transform_3(%arg0: i32) -> (i32, i32) {
    %c0_i32 = arith.constant 0 : i32
    %c0_i32_0 = arith.constant 0 : i32
    %c0_i32_1 = arith.constant 0 : i32
    return %c0_i32, %c0_i32_0 : i32, i32
  }
  func.func @transform_4(%arg0: i32) -> (i32, i32) {
    %c0_i32 = arith.constant 0 : i32
    %c0_i32_0 = arith.constant 0 : i32
    %c0_i32_1 = arith.constant 0 : i32
    return %c0_i32, %c0_i32_0 : i32, i32
  }
  func.func @transform_5(%arg0: i32) -> (i32, i32, i32) {
    %c0_i32 = arith.constant 0 : i32
    %c0_i32_0 = arith.constant 0 : i32
    %c0_i32_1 = arith.constant 0 : i32
    return %arg0, %c0_i32, %c0_i32_0 : i32, i32, i32
  }
}

</mosaic_0001>

<llo_original>
// kernel: tpu_custom_call.1
$region0: #{tpu_custom_call.1}
  #allocation0 [shape = 'u32[]', space=smem, size = 0x4, offset = 0x4, fixed_abs, tag = 'smem constant byte address 0x4 - core index']
  #allocation1 [shape = 'u32[144,128]{1,0:T(1,128)}', space=vmem, size = 0x12000, scoped, tag = 'internal scratch']
  #allocation2 [shape = 'f32[1,1]{1,0:T(1,128)S(6)}', space=smem, size = 0x200, scoped, tag = 'scoped memory for tpu_custom_call.1']
  %s0 = inlined_call_operand.hbm [shape: f32[2,32,256], index: 0, kind: input, shape index: {}]
  %s1 = inlined_call_operand.vmem [shape: bf16[4,32], index: 1, kind: input, shape index: {}]
  %s2 = inlined_call_operand.hbm [shape: bf16[20,32], index: 2, kind: input, shape index: {}]
  %s3 = inlined_call_operand.hbm [shape: bf16[16,32], index: 3, kind: input, shape index: {}]
  %s4 = inlined_call_operand.<no memory space> [shape: f32[1,1], index: 4, kind: input, shape index: {}]
  %s5 = inlined_call_operand.hbm [shape: f32[2,32,256], index: 5, kind: output, shape index: {}]
  %s6 = sld [smem:[#allocation0]]
  $region42: #{tpu_custom_call.1} parent=0
    _
  %s8 = ssub.s32 1, %s6
  %s9 = scalar_select 0, %s8, %s6
  %10 = sst [smem:[#allocation2]] %s4
  $region1: #{tpu_custom_call.1} parent=0
    #allocation3 [shape = 'u8[65536]{0}', space=vmem, size = 0x10000, scoped, tag = 'input window, operand 0, single buffered']
    #allocation4 [shape = 's32[1]{0}', space=sflag, size = 0x4, scoped, tag = 'scoped memory for tpu_custom_call.1']
    #allocation5 [shape = 's32[1]{0}', space=sflag, size = 0x4, scoped, tag = 'scoped memory for tpu_custom_call.1']
    #allocation6 [shape = 'u8[6144]{0}', space=vmem, size = 0x1800, scoped, tag = 'input window, operand 2, single buffered']
    #allocation7 [shape = 's32[1]{0}', space=sflag, size = 0x4, scoped, tag = 'scoped memory for tpu_custom_call.1']
    #allocation8 [shape = 'u8[4096]{0}', space=vmem, size = 0x1000, scoped, tag = 'input window, operand 3, single buffered']
    #allocation9 [shape = 'u8[65536]{0}', space=vmem, size = 0x10000, scoped, tag = 'output window, operand 0, single buffered']
    %11 = vsyncpa [#allocation4], 0
    %12 = vsyncpa [#allocation7], 0
    %13 = vsyncpa [#allocation5], 0
    // Predicated region
    $region2: #{tpu_custom_call.1} parent=1 // pred_check
      _
    $region3: #{tpu_custom_call.1} parent=1 // pred_check_branch
      %15 = sbr.rel (0) target = $region5
    $region4: #{tpu_custom_call.1} parent=1 // pred_region
      %s17 = ssub.s32 2048, 2048
      %18 = vsyncadd [#allocation4], %s17
      %s19 = sshll.u32 [#allocation3], 4
      %s20 = int_to_ptr.vmem [resolvable:$true] %s19
      %25 = dma.hbm_to_vmem [thread:$0]  %s0, 2048, %s20, [#allocation4], 256, 256, 16
    $region5: #{tpu_custom_call.1} parent=1 // pred_fallthru
      _
    // Predicated region
    $region6: #{tpu_custom_call.1} parent=1 // pred_check
      _
    $region7: #{tpu_custom_call.1} parent=1 // pred_check_branch
      %27 = sbr.rel (0) target = $region9
    $region8: #{tpu_custom_call.1} parent=1 // pred_region
      _
    $region9: #{tpu_custom_call.1} parent=1 // pred_fallthru
      _
    // Predicated region
    $region10: #{tpu_custom_call.1} parent=1 // pred_check
      _
    $region11: #{tpu_custom_call.1} parent=1 // pred_check_branch
      %29 = sbr.rel (0) target = $region13
    $region12: #{tpu_custom_call.1} parent=1 // pred_region
      %s31 = ssub.s32 192, 192
      %32 = vsyncadd [#allocation7], %s31
      %s33 = sshll.u32 [#allocation6], 4
      %s34 = int_to_ptr.vmem [resolvable:$true] %s33
      %39 = dma.hbm_to_vmem [thread:$0]  %s2, 192, %s34, [#allocation7], 64, 64, 4
    $region13: #{tpu_custom_call.1} parent=1 // pred_fallthru
      _
    // Predicated region
    $region14: #{tpu_custom_call.1} parent=1 // pred_check
      _
    $region15: #{tpu_custom_call.1} parent=1 // pred_check_branch
      %41 = sbr.rel (0) target = $region17
    $region16: #{tpu_custom_call.1} parent=1 // pred_region
      %s43 = ssub.s32 128, 128
      %44 = vsyncadd [#allocation7], %s43
      %s45 = sshll.u32 [#allocation8], 4
      %s46 = int_to_ptr.vmem [resolvable:$true] %s45
      %51 = dma.hbm_to_vmem [thread:$0]  %s3, 128, %s46, [#allocation7], 64, 64, 4
    $region17: #{tpu_custom_call.1} parent=1 // pred_fallthru
      _
    // Predicated region
    $region18: #{tpu_custom_call.1} parent=1 // pred_check
      _
    $region19: #{tpu_custom_call.1} parent=1 // pred_check_branch
      %53 = sbr.rel (0) target = $region21
    $region20: #{tpu_custom_call.1} parent=1 // pred_region
      _
    $region21: #{tpu_custom_call.1} parent=1 // pred_fallthru
      _
    // Predicated region
    $region22: #{tpu_custom_call.1} parent=1 // pred_check
      _
    $region23: #{tpu_custom_call.1} parent=1 // pred_check_branch
      %55 = sbr.rel (0) target = $region25
    $region24: #{tpu_custom_call.1} parent=1 // pred_region
      %56 = dma.done [#allocation4], 2048
    $region25: #{tpu_custom_call.1} parent=1 // pred_fallthru
      _
    // Predicated region
    $region26: #{tpu_custom_call.1} parent=1 // pred_check
      _
    $region27: #{tpu_custom_call.1} parent=1 // pred_check_branch
      %58 = sbr.rel (0) target = $region29
    $region28: #{tpu_custom_call.1} parent=1 // pred_region
      %59 = dma.done [#allocation7], 192
    $region29: #{tpu_custom_call.1} parent=1 // pred_fallthru
      _
    // Predicated region
    $region30: #{tpu_custom_call.1} parent=1 // pred_check
      _
    $region31: #{tpu_custom_call.1} parent=1 // pred_check_branch
      %61 = sbr.rel (0) target = $region33
    $region32: #{tpu_custom_call.1} parent=1 // pred_region
      %62 = dma.done [#allocation7], 128
    $region33: #{tpu_custom_call.1} parent=1 // pred_fallthru
      _
    %s64 = sld [smem:[#allocation2]]
    %v65 = vld [vmem:[%s1] sm:$0x3]
    %v66 = vld [vmem:[#allocation6] sm:$0xf]
    %v67 = vld [vmem:[#allocation6 + $0x4] sm:$0xf]
    %v68 = vld [vmem:[#allocation6 + $0x8] sm:$0x3]
    %v69 = vld [vmem:[#allocation8] sm:$0xf]
    %v70 = vld [vmem:[#allocation8 + $0x4] sm:$0xf]
    %v71 = vld [vmem:[#allocation3] sm:$0xff]
    %v72 = vld [vmem:[#allocation3 + $0x8] sm:$0xff]
    %v73 = vld [vmem:[#allocation3 + $0x10] sm:$0xff]
    %v74 = vld [vmem:[#allocation3 + $0x18] sm:$0xff]
    %v75 = vld [vmem:[#allocation3 + $0x20] sm:$0xff]
    %v76 = vld [vmem:[#allocation3 + $0x28] sm:$0xff]
    %v77 = vld [vmem:[#allocation3 + $0x30] sm:$0xff]
    %v78 = vld [vmem:[#allocation3 + $0x38] sm:$0xff]
    %v79 = vpack.c.bf16 %v73, %v71
    %v80 = vpack.c.bf16 %v74, %v72
    %v81 = vpack.c.bf16 %v77, %v75
    %v82 = vpack.c.bf16 %v78, %v76
    %vm83 = vcmask 261120
    %v85 = vsel %vm83, %v65, 0
    %87 = vmatprep.subr.bf16.mxu0 0
    %88 = vmatpush1.bf16.msra.mxu0 0
    %89 = vmatprep.subr.bf16.mxu0 0
    %90 = vmatpush1.bf16.msra.mxu0 0
    %91 = vmatprep.subr.bf16.mxu0 0
    %92 = vmatpush1.bf16.msra.mxu0 0
    %93 = vmatprep.subr.bf16.mxu0 0
    %94 = vmatpush1.bf16.msra.mxu0 0
    %95 = vmatprep.subr.bf16.mxu0 0
    %96 = vmatpush1.bf16.msra.mxu0 0
    %97 = vmatprep.subr.bf16.mxu0 0
    %98 = vmatpush1.bf16.msra.mxu0 0
    %99 = vmatprep.subr.bf16.mxu0 %v82
    %100 = vmatpush1.bf16.msra.mxu0 %v81
    %101 = vmatprep.subr.bf16.mxu0 %v80
    %102 = vmatpush1.bf16.msra.mxu0 %v79
    %103 = vmatprep.subr.bf16.mxu0 0
    %104 = vmatpush2.bf16.msra.mxu0 0
    %105 = vmatprep.subr.bf16.mxu0 0
    %106 = vmatpush2.bf16.msra.mxu0 0
    %107 = vmatprep.subr.bf16.mxu0 0
    %108 = vmatpush2.bf16.msra.mxu0 0
    %109 = vmatprep.subr.bf16.mxu0 0
    %110 = vmatpush2.bf16.msra.mxu0 0
    %111 = vmatprep.subr.bf16.mxu0 0
    %112 = vmatpush2.bf16.msra.mxu0 0
    %113 = vmatprep.subr.bf16.mxu0 0
    %114 = vmatpush2.bf16.msra.mxu0 0
    %115 = vmatprep.subr.bf16.mxu0 0
    %116 = vmatpush2.bf16.msra.mxu0 0
    %117 = vmatprep.subr.bf16.mxu0 0
    %118 = vmatpush2.bf16.msra.mxu0 0
    %119 = vmatprep.mubr.bf16.mxu0 0
    %120 = vmatmul.mubr.bf16.gmra.mxu0 %v85
    %v121 = vpop.f32.mrf.mxu0
    %v122 = vadd.f32 0.0, %v121
    %v123 = vpop.f32.mrf.mxu0
    %v124 = vadd.f32 0.0, %v123
    %v125 = vpop.f32.mrf.mxu0
    %v126 = vpop.f32.mrf.mxu0
    %127 = vdwg.mxu0
    %v131 = vunpack.c.l.b16 %v66
    %v132 = vunpack.c.l.b16 %v67
    %v133 = vunpack.c.l.b16 %v68
    %v134 = vpack.c.b16 %v132, %v131
    %v135 = vpack.c.b16 %v133, %v133
    %v137 = vsel %vm83, %v134, 0
    %v140 = vsel %vm83, %v135, 0
    %142 = vmatprep.subr.bf16.mxu0 0
    %143 = vmatpush1.bf16.msra.mxu0 0
    %144 = vmatprep.subr.bf16.mxu0 0
    %145 = vmatpush1.bf16.msra.mxu0 0
    %146 = vmatprep.subr.bf16.mxu0 0
    %147 = vmatpush1.bf16.msra.mxu0 0
    %148 = vmatprep.subr.bf16.mxu0 0
    %149 = vmatpush1.bf16.msra.mxu0 0
    %150 = vmatprep.subr.bf16.mxu0 0
    %151 = vmatpush1.bf16.msra.mxu0 0
    %152 = vmatprep.subr.bf16.mxu0 0
    %153 = vmatpush1.bf16.msra.mxu0 0
    %154 = vmatprep.subr.bf16.mxu0 %v82
    %155 = vmatpush1.bf16.msra.mxu0 %v81
    %156 = vmatprep.subr.bf16.mxu0 %v80
    %157 = vmatpush1.bf16.msra.mxu0 %v79
    %158 = vmatprep.subr.bf16.mxu0 0
    %159 = vmatpush2.bf16.msra.mxu0 0
    %160 = vmatprep.subr.bf16.mxu0 0
    %161 = vmatpush2.bf16.msra.mxu0 0
    %162 = vmatprep.subr.bf16.mxu0 0
    %163 = vmatpush2.bf16.msra.mxu0 0
    %164 = vmatprep.subr.bf16.mxu0 0
    %165 = vmatpush2.bf16.msra.mxu0 0
    %166 = vmatprep.subr.bf16.mxu0 0
    %167 = vmatpush2.bf16.msra.mxu0 0
    %168 = vmatprep.subr.bf16.mxu0 0
    %169 = vmatpush2.bf16.msra.mxu0 0
    %170 = vmatprep.subr.bf16.mxu0 0
    %171 = vmatpush2.bf16.msra.mxu0 0
    %172 = vmatprep.subr.bf16.mxu0 0
    %173 = vmatpush2.bf16.msra.mxu0 0
    %174 = vmatprep.mubr.bf16.mxu0 0
    %175 = vmatmul.mubr.bf16.gmra.mxu0 %v137
    %v176 = vpop.f32.mrf.mxu0
    %v177 = vadd.f32 0.0, %v176
    %v178 = vpop.f32.mrf.mxu0
    %v179 = vadd.f32 0.0, %v178
    %v180 = vpop.f32.mrf.mxu0
    %v181 = vadd.f32 0.0, %v180
    %v182 = vpop.f32.mrf.mxu0
    %v183 = vadd.f32 0.0, %v182
    %184 = vmatprep.mubr.bf16.mxu0 0
    %185 = vmatmul.mubr.bf16.gmra.mxu0 %v140
    %v186 = vpop.f32.mrf.mxu0
    %v187 = vadd.f32 0.0, %v186
    %v188 = vpop.f32.mrf.mxu0
    %v189 = vadd.f32 0.0, %v188
    %v190 = vpop.f32.mrf.mxu0
    %v191 = vpop.f32.mrf.mxu0
    %192 = vdwg.mxu0
    %196 = vrot.lane.b32.xlu0 %v177, 64
    %v197 = vpop.permute.xlu0 %196
    %198 = vrot.lane.b32.xlu0 %v181, 64
    %v199 = vpop.permute.xlu0 %198
    %200 = vrot.lane.b32.xlu0 %v187, 64
    %v201 = vpop.permute.xlu0 %200
    %v205 = vmax.f32 %v177, %v197
    %v206 = vmax.f32 %v181, %v199
    %v207 = vmax.f32 %v187, %v201
    %211 = vrot.lane.b32.xlu0 %v179, 64
    %v212 = vpop.permute.xlu0 %211
    %213 = vrot.lane.b32.xlu0 %v183, 64
    %v214 = vpop.permute.xlu0 %213
    %215 = vrot.lane.b32.xlu0 %v189, 64
    %v216 = vpop.permute.xlu0 %215
    %v220 = vmax.f32 %v179, %v212
    %v221 = vmax.f32 %v183, %v214
    %v222 = vmax.f32 %v189, %v216
    %v223 = vmax.f32 %v205, %v220
    %v224 = vmax.f32 %v206, %v221
    %v225 = vmax.f32 %v207, %v222
    %v226 = vpack.c.bf16 %v224, %v223
    %v227 = vpack.c.bf16 %v225, %v225
    %v230 = vunpack.c.l.b16 %v69
    %v231 = vunpack.c.l.b16 %v70
    %v232 = vpack.c.b16 %v231, %v230
    %234 = vxpose.xlu0.c.b16.start [1/8] %v232, 128
    %235 = vxpose.xlu0.c.b16.cont [2/8] 0, 128
    %236 = vxpose.xlu0.c.b16.cont [3/8] 0, 128
    %237 = vxpose.xlu0.c.b16.cont [4/8] 0, 128
    %238 = vxpose.xlu0.c.b16.cont [5/8] 0, 128
    %239 = vxpose.xlu0.c.b16.cont [6/8] 0, 128
    %240 = vxpose.xlu0.c.b16.cont [7/8] 0, 128
    %241 = vxpose.xlu0.c.b16.end [8/8] 0, 128
    %v242 = vpop.trf.xlu0
    %v243 = vpop.trf.xlu0
    %v244 = vpop.trf.xlu0
    %v245 = vpop.trf.xlu0
    %v246 = vpop.trf.xlu0
    %v247 = vpop.trf.xlu0
    %v248 = vpop.trf.xlu0
    %v249 = vpop.trf.xlu0
    %vm250 = vcmask 130048
    %v252 = vsel %vm250, %v242, 0
    %v255 = vsel %vm250, %v243, 0
    %257 = vmatprep.subr.bf16.mxu0 0
    %258 = vmatpush1.bf16.msra.mxu0 0
    %259 = vmatprep.subr.bf16.mxu0 0
    %260 = vmatpush1.bf16.msra.mxu0 0
    %261 = vmatprep.subr.bf16.mxu0 0
    %262 = vmatpush1.bf16.msra.mxu0 0
    %263 = vmatprep.subr.bf16.mxu0 0
    %264 = vmatpush1.bf16.msra.mxu0 0
    %265 = vmatprep.subr.bf16.mxu0 0
    %266 = vmatpush1.bf16.msra.mxu0 0
    %267 = vmatprep.subr.bf16.mxu0 0
    %268 = vmatpush1.bf16.msra.mxu0 0
    %269 = vmatprep.subr.bf16.mxu0 0
    %270 = vmatpush1.bf16.msra.mxu0 0
    %271 = vmatprep.subr.bf16.mxu0 0
    %272 = vmatpush1.bf16.msra.mxu0 %v226
    %273 = vmatprep.subr.bf16.mxu0 0
    %274 = vmatpush2.bf16.msra.mxu0 0
    %275 = vmatprep.subr.bf16.mxu0 0
    %276 = vmatpush2.bf16.msra.mxu0 0
    %277 = vmatprep.subr.bf16.mxu0 0
    %278 = vmatpush2.bf16.msra.mxu0 0
    %279 = vmatprep.subr.bf16.mxu0 0
    %280 = vmatpush2.bf16.msra.mxu0 0
    %281 = vmatprep.subr.bf16.mxu0 0
    %282 = vmatpush2.bf16.msra.mxu0 0
    %283 = vmatprep.subr.bf16.mxu0 0
    %284 = vmatpush2.bf16.msra.mxu0 0
    %285 = vmatprep.subr.bf16.mxu0 0
    %286 = vmatpush2.bf16.msra.mxu0 0
    %287 = vmatprep.subr.bf16.mxu0 0
    %288 = vmatpush2.bf16.msra.mxu0 0
    %289 = vmatprep.mubr.bf16.mxu0 0
    %290 = vmatmul.mubr.bf16.gmra.mxu0 %v252
    %v291 = vpop.f32.mrf.mxu0
    %v292 = vadd.f32 0.0, %v291
    %v293 = vpop.f32.mrf.mxu0
    %v294 = vpop.f32.mrf.mxu0
    %v295 = vadd.f32 0.0, %v294
    %v296 = vpop.f32.mrf.mxu0
    %297 = vmatprep.mubr.bf16.mxu0 0
    %298 = vmatmul.mubr.bf16.gmra.mxu0 %v255
    %v299 = vpop.f32.mrf.mxu0
    %v300 = vadd.f32 0.0, %v299
    %v301 = vpop.f32.mrf.mxu0
    %v302 = vpop.f32.mrf.mxu0
    %v303 = vadd.f32 0.0, %v302
    %v304 = vpop.f32.mrf.mxu0
    %305 = vdwg.mxu0
    %v306 = vpack.c.bf16 %v295, %v292
    %v307 = vpack.c.bf16 %v303, %v300
    %v308 = vpack.c.bf16 %v122, %v122
    %v309 = vpack.c.bf16 %v124, %v124
    %310 = vxpose.xlu0.c.b16.start [1/8] %v308, 128
    %311 = vxpose.xlu0.c.b16.cont [2/8] 0, 128
    %312 = vxpose.xlu0.c.b16.cont [3/8] 0, 128
    %313 = vxpose.xlu0.c.b16.cont [4/8] 0, 128
    %314 = vxpose.xlu0.c.b16.cont [5/8] 0, 128
    %315 = vxpose.xlu0.c.b16.cont [6/8] 0, 128
    %316 = vxpose.xlu0.c.b16.cont [7/8] 0, 128
    %317 = vxpose.xlu0.c.b16.end [8/8] 0, 128
    %v318 = vpop.trf.xlu0
    %v319 = vpop.trf.xlu0
    %v320 = vpop.trf.xlu0
    %v321 = vpop.trf.xlu0
    %v322 = vpop.trf.xlu0
    %v323 = vpop.trf.xlu0
    %v324 = vpop.trf.xlu0
    %v325 = vpop.trf.xlu0
    %326 = vxpose.xlu0.c.b16.start [1/8] %v309, 128
    %327 = vxpose.xlu0.c.b16.cont [2/8] 0, 128
    %328 = vxpose.xlu0.c.b16.cont [3/8] 0, 128
    %329 = vxpose.xlu0.c.b16.cont [4/8] 0, 128
    %330 = vxpose.xlu0.c.b16.cont [5/8] 0, 128
    %331 = vxpose.xlu0.c.b16.cont [6/8] 0, 128
    %332 = vxpose.xlu0.c.b16.cont [7/8] 0, 128
    %333 = vxpose.xlu0.c.b16.end [8/8] 0, 128
    %v334 = vpop.trf.xlu0
    %v335 = vpop.trf.xlu0
    %v336 = vpop.trf.xlu0
    %v337 = vpop.trf.xlu0
    %v338 = vpop.trf.xlu0
    %v339 = vpop.trf.xlu0
    %v340 = vpop.trf.xlu0
    %v341 = vpop.trf.xlu0
    %vm342 = vcmask 31744
    %v344 = vsel %vm342, %v318, 0
    %v347 = vsel %vm342, %v319, 0
    %v350 = vsel %vm342, %v320, 0
    %v353 = vsel %vm342, %v321, 0
    %v356 = vsel %vm342, %v322, 0
    %v359 = vsel %vm342, %v323, 0
    %v362 = vsel %vm342, %v324, 0
    %v365 = vsel %vm342, %v325, 0
    %v368 = vsel %vm342, %v334, 0
    %v371 = vsel %vm342, %v335, 0
    %v374 = vsel %vm342, %v336, 0
    %v377 = vsel %vm342, %v337, 0
    %v380 = vsel %vm342, %v338, 0
    %v383 = vsel %vm342, %v339, 0
    %v386 = vsel %vm342, %v340, 0
    %v389 = vsel %vm342, %v341, 0
    %vm391 = vcmask 1041408
    %v393 = vsel %vm391, %v227, 0
    %395 = vmatprep.subr.bf16.mxu0 0
    %396 = vmatpush1.bf16.msra.mxu0 0
    %397 = vmatprep.subr.bf16.mxu0 0
    %398 = vmatpush1.bf16.msra.mxu0 0
    %399 = vmatprep.subr.bf16.mxu0 0
    %400 = vmatpush1.bf16.msra.mxu0 0
    %401 = vmatprep.subr.bf16.mxu0 0
    %402 = vmatpush1.bf16.msra.mxu0 0
    %403 = vmatprep.subr.bf16.mxu0 0
    %404 = vmatpush1.bf16.msra.mxu0 0
    %405 = vmatprep.subr.bf16.mxu0 0
    %406 = vmatpush1.bf16.msra.mxu0 0
    %407 = vmatprep.subr.bf16.mxu0 0
    %408 = vmatpush1.bf16.msra.mxu0 0
    %409 = vmatprep.subr.bf16.mxu0 0
    %410 = vmatpush1.bf16.msra.mxu0 %v393
    %411 = vmatprep.subr.bf16.mxu0 0
    %412 = vmatpush2.bf16.msra.mxu0 0
    %413 = vmatprep.subr.bf16.mxu0 0
    %414 = vmatpush2.bf16.msra.mxu0 0
    %415 = vmatprep.subr.bf16.mxu0 0
    %416 = vmatpush2.bf16.msra.mxu0 0
    %417 = vmatprep.subr.bf16.mxu0 0
    %418 = vmatpush2.bf16.msra.mxu0 0
    %419 = vmatprep.subr.bf16.mxu0 0
    %420 = vmatpush2.bf16.msra.mxu0 0
    %421 = vmatprep.subr.bf16.mxu0 0
    %422 = vmatpush2.bf16.msra.mxu0 0
    %423 = vmatprep.subr.bf16.mxu0 0
    %424 = vmatpush2.bf16.msra.mxu0 0
    %425 = vmatprep.subr.bf16.mxu0 0
    %426 = vmatpush2.bf16.msra.mxu0 0
    %427 = vmatprep.mubr.bf16.mxu0 0
    %428 = vmatmul.mubr.bf16.gmra.mxu0 %v344
    %v429 = vpop.f32.mrf.mxu0
    %v430 = vadd.f32 0.0, %v429
    %v431 = vpop.f32.mrf.mxu0
    %v432 = vpop.f32.mrf.mxu0
    %v433 = vadd.f32 0.0, %v432
    %v434 = vpop.f32.mrf.mxu0
    %435 = vmatprep.mubr.bf16.mxu0 0
    %436 = vmatmul.mubr.bf16.gmra.mxu0 %v347
    %v437 = vpop.f32.mrf.mxu0
    %v438 = vadd.f32 0.0, %v437
    %v439 = vpop.f32.mrf.mxu0
    %v440 = vpop.f32.mrf.mxu0
    %v441 = vadd.f32 0.0, %v440
    %v442 = vpop.f32.mrf.mxu0
    %443 = vmatprep.mubr.bf16.mxu0 0
    %444 = vmatmul.mubr.bf16.gmra.mxu0 %v350
    %v445 = vpop.f32.mrf.mxu0
    %v446 = vadd.f32 0.0, %v445
    %v447 = vpop.f32.mrf.mxu0
    %v448 = vpop.f32.mrf.mxu0
    %v449 = vadd.f32 0.0, %v448
    %v450 = vpop.f32.mrf.mxu0
    %451 = vmatprep.mubr.bf16.mxu0 0
    %452 = vmatmul.mubr.bf16.gmra.mxu0 %v353
    %v453 = vpop.f32.mrf.mxu0
    %v454 = vadd.f32 0.0, %v453
    %v455 = vpop.f32.mrf.mxu0
    %v456 = vpop.f32.mrf.mxu0
    %v457 = vadd.f32 0.0, %v456
    %v458 = vpop.f32.mrf.mxu0
    %459 = vmatprep.mubr.bf16.mxu0 0
    %460 = vmatmul.mubr.bf16.gmra.mxu0 %v356
    %v461 = vpop.f32.mrf.mxu0
    %v462 = vadd.f32 0.0, %v461
    %v463 = vpop.f32.mrf.mxu0
    %v464 = vpop.f32.mrf.mxu0
    %v465 = vadd.f32 0.0, %v464
    %v466 = vpop.f32.mrf.mxu0
    %467 = vmatprep.mubr.bf16.mxu0 0
    %468 = vmatmul.mubr.bf16.gmra.mxu0 %v359
    %v469 = vpop.f32.mrf.mxu0
    %v470 = vadd.f32 0.0, %v469
    %v471 = vpop.f32.mrf.mxu0
    %v472 = vpop.f32.mrf.mxu0
    %v473 = vadd.f32 0.0, %v472
    %v474 = vpop.f32.mrf.mxu0
    %475 = vmatprep.mubr.bf16.mxu0 0
    %476 = vmatmul.mubr.bf16.gmra.mxu0 %v362
    %v477 = vpop.f32.mrf.mxu0
    %v478 = vadd.f32 0.0, %v477
    %v479 = vpop.f32.mrf.mxu0
    %v480 = vpop.f32.mrf.mxu0
    %v481 = vadd.f32 0.0, %v480
    %v482 = vpop.f32.mrf.mxu0
    %483 = vmatprep.mubr.bf16.mxu0 0
    %484 = vmatmul.mubr.bf16.gmra.mxu0 %v365
    %v485 = vpop.f32.mrf.mxu0
    %v486 = vadd.f32 0.0, %v485
    %v487 = vpop.f32.mrf.mxu0
    %v488 = vpop.f32.mrf.mxu0
    %v489 = vadd.f32 0.0, %v488
    %v490 = vpop.f32.mrf.mxu0
    %491 = vmatprep.mubr.bf16.mxu0 0
    %492 = vmatmul.mubr.bf16.gmra.mxu0 %v368
    %v493 = vpop.f32.mrf.mxu0
    %v494 = vadd.f32 0.0, %v493
    %v495 = vpop.f32.mrf.mxu0
    %v496 = vpop.f32.mrf.mxu0
    %v497 = vadd.f32 0.0, %v496
    %v498 = vpop.f32.mrf.mxu0
    %499 = vmatprep.mubr.bf16.mxu0 0
    %500 = vmatmul.mubr.bf16.gmra.mxu0 %v371
    %v501 = vpop.f32.mrf.mxu0
    %v502 = vadd.f32 0.0, %v501
    %v503 = vpop.f32.mrf.mxu0
    %v504 = vpop.f32.mrf.mxu0
    %v505 = vadd.f32 0.0, %v504
    %v506 = vpop.f32.mrf.mxu0
    %507 = vmatprep.mubr.bf16.mxu0 0
    %508 = vmatmul.mubr.bf16.gmra.mxu0 %v374
    %v509 = vpop.f32.mrf.mxu0
    %v510 = vadd.f32 0.0, %v509
    %v511 = vpop.f32.mrf.mxu0
    %v512 = vpop.f32.mrf.mxu0
    %v513 = vadd.f32 0.0, %v512
    %v514 = vpop.f32.mrf.mxu0
    %515 = vmatprep.mubr.bf16.mxu0 0
    %516 = vmatmul.mubr.bf16.gmra.mxu0 %v377
    %v517 = vpop.f32.mrf.mxu0
    %v518 = vadd.f32 0.0, %v517
    %v519 = vpop.f32.mrf.mxu0
    %v520 = vpop.f32.mrf.mxu0
    %v521 = vadd.f32 0.0, %v520
    %v522 = vpop.f32.mrf.mxu0
    %523 = vmatprep.mubr.bf16.mxu0 0
    %524 = vmatmul.mubr.bf16.gmra.mxu0 %v380
    %v525 = vpop.f32.mrf.mxu0
    %v526 = vadd.f32 0.0, %v525
    %v527 = vpop.f32.mrf.mxu0
    %v528 = vpop.f32.mrf.mxu0
    %v529 = vadd.f32 0.0, %v528
    %v530 = vpop.f32.mrf.mxu0
    %531 = vmatprep.mubr.bf16.mxu0 0
    %532 = vmatmul.mubr.bf16.gmra.mxu0 %v383
    %v533 = vpop.f32.mrf.mxu0
    %v534 = vadd.f32 0.0, %v533
    %v535 = vpop.f32.mrf.mxu0
    %v536 = vpop.f32.mrf.mxu0
    %v537 = vadd.f32 0.0, %v536
    %v538 = vpop.f32.mrf.mxu0
    %539 = vmatprep.mubr.bf16.mxu0 0
    %540 = vmatmul.mubr.bf16.gmra.mxu0 %v386
    %v541 = vpop.f32.mrf.mxu0
    %v542 = vadd.f32 0.0, %v541
    %v543 = vpop.f32.mrf.mxu0
    %v544 = vpop.f32.mrf.mxu0
    %v545 = vadd.f32 0.0, %v544
    %v546 = vpop.f32.mrf.mxu0
    %547 = vmatprep.mubr.bf16.mxu0 0
    %548 = vmatmul.mubr.bf16.gmra.mxu0 %v389
    %v549 = vpop.f32.mrf.mxu0
    %v550 = vadd.f32 0.0, %v549
    %v551 = vpop.f32.mrf.mxu0
    %v552 = vpop.f32.mrf.mxu0
    %v553 = vadd.f32 0.0, %v552
    %v554 = vpop.f32.mrf.mxu0
    %555 = vdwg.mxu0
    %vm556 = vcmask 523264
    %v557 = vsel %vm556, %v430, -inf
    %558 = vmax.xlane.f32.xlu0 %v557
    %v559 = vpop.xlane.xlu0 %558
    %v560 = vsel %vm556, %v433, -inf
    %561 = vmax.xlane.f32.xlu0 %v560
    %v562 = vpop.xlane.xlu0 %561
    %v563 = vsel %vm556, %v438, -inf
    %564 = vmax.xlane.f32.xlu0 %v563
    %v565 = vpop.xlane.xlu0 %564
    %v566 = vsel %vm556, %v441, -inf
    %567 = vmax.xlane.f32.xlu0 %v566
    %v568 = vpop.xlane.xlu0 %567
    %v569 = vsel %vm556, %v446, -inf
    %570 = vmax.xlane.f32.xlu0 %v569
    %v571 = vpop.xlane.xlu0 %570
    %v572 = vsel %vm556, %v449, -inf
    %573 = vmax.xlane.f32.xlu0 %v572
    %v574 = vpop.xlane.xlu0 %573
    %v575 = vsel %vm556, %v454, -inf
    %576 = vmax.xlane.f32.xlu0 %v575
    %v577 = vpop.xlane.xlu0 %576
    %v578 = vsel %vm556, %v457, -inf
    %579 = vmax.xlane.f32.xlu0 %v578
    %v580 = vpop.xlane.xlu0 %579
    %v581 = vsel %vm556, %v462, -inf
    %582 = vmax.xlane.f32.xlu0 %v581
    %v583 = vpop.xlane.xlu0 %582
    %v584 = vsel %vm556, %v465, -inf
    %585 = vmax.xlane.f32.xlu0 %v584
    %v586 = vpop.xlane.xlu0 %585
    %v587 = vsel %vm556, %v470, -inf
    %588 = vmax.xlane.f32.xlu0 %v587
    %v589 = vpop.xlane.xlu0 %588
    %v590 = vsel %vm556, %v473, -inf
    %591 = vmax.xlane.f32.xlu0 %v590
    %v592 = vpop.xlane.xlu0 %591
    %v593 = vsel %vm556, %v478, -inf
    %594 = vmax.xlane.f32.xlu0 %v593
    %v595 = vpop.xlane.xlu0 %594
    %v596 = vsel %vm556, %v481, -inf
    %597 = vmax.xlane.f32.xlu0 %v596
    %v598 = vpop.xlane.xlu0 %597
    %v599 = vsel %vm556, %v486, -inf
    %600 = vmax.xlane.f32.xlu0 %v599
    %v601 = vpop.xlane.xlu0 %600
    %v602 = vsel %vm556, %v489, -inf
    %603 = vmax.xlane.f32.xlu0 %v602
    %v604 = vpop.xlane.xlu0 %603
    %v605 = vsel %vm556, %v494, -inf
    %606 = vmax.xlane.f32.xlu0 %v605
    %v607 = vpop.xlane.xlu0 %606
    %v608 = vsel %vm556, %v497, -inf
    %609 = vmax.xlane.f32.xlu0 %v608
    %v610 = vpop.xlane.xlu0 %609
    %v611 = vsel %vm556, %v502, -inf
    %612 = vmax.xlane.f32.xlu0 %v611
    %v613 = vpop.xlane.xlu0 %612
    %v614 = vsel %vm556, %v505, -inf
    %615 = vmax.xlane.f32.xlu0 %v614
    %v616 = vpop.xlane.xlu0 %615
    %v617 = vsel %vm556, %v510, -inf
    %618 = vmax.xlane.f32.xlu0 %v617
    %v619 = vpop.xlane.xlu0 %618
    %v620 = vsel %vm556, %v513, -inf
    %621 = vmax.xlane.f32.xlu0 %v620
    %v622 = vpop.xlane.xlu0 %621
    %v623 = vsel %vm556, %v518, -inf
    %624 = vmax.xlane.f32.xlu0 %v623
    %v625 = vpop.xlane.xlu0 %624
    %v626 = vsel %vm556, %v521, -inf
    %627 = vmax.xlane.f32.xlu0 %v626
    %v628 = vpop.xlane.xlu0 %627
    %v629 = vsel %vm556, %v526, -inf
    %630 = vmax.xlane.f32.xlu0 %v629
    %v631 = vpop.xlane.xlu0 %630
    %v632 = vsel %vm556, %v529, -inf
    %633 = vmax.xlane.f32.xlu0 %v632
    %v634 = vpop.xlane.xlu0 %633
    %v635 = vsel %vm556, %v534, -inf
    %636 = vmax.xlane.f32.xlu0 %v635
    %v637 = vpop.xlane.xlu0 %636
    %v638 = vsel %vm556, %v537, -inf
    %639 = vmax.xlane.f32.xlu0 %v638
    %v640 = vpop.xlane.xlu0 %639
    %v641 = vsel %vm556, %v542, -inf
    %642 = vmax.xlane.f32.xlu0 %v641
    %v643 = vpop.xlane.xlu0 %642
    %v644 = vsel %vm556, %v545, -inf
    %645 = vmax.xlane.f32.xlu0 %v644
    %v646 = vpop.xlane.xlu0 %645
    %v647 = vsel %vm556, %v550, -inf
    %648 = vmax.xlane.f32.xlu0 %v647
    %v649 = vpop.xlane.xlu0 %648
    %v650 = vsel %vm556, %v553, -inf
    %651 = vmax.xlane.f32.xlu0 %v650
    %v652 = vpop.xlane.xlu0 %651
    %v653 = vsub.f32 %v430, %v559
    %v654 = vsub.f32 %v433, %v562
    %v655 = vsub.f32 %v438, %v565
    %v656 = vsub.f32 %v441, %v568
    %v657 = vsub.f32 %v446, %v571
    %v658 = vsub.f32 %v449, %v574
    %v659 = vsub.f32 %v454, %v577
    %v660 = vsub.f32 %v457, %v580
    %v661 = vsub.f32 %v462, %v583
    %v662 = vsub.f32 %v465, %v586
    %v663 = vsub.f32 %v470, %v589
    %v664 = vsub.f32 %v473, %v592
    %v665 = vsub.f32 %v478, %v595
    %v666 = vsub.f32 %v481, %v598
    %v667 = vsub.f32 %v486, %v601
    %v668 = vsub.f32 %v489, %v604
    %v669 = vsub.f32 %v494, %v607
    %v670 = vsub.f32 %v497, %v610
    %v671 = vsub.f32 %v502, %v613
    %v672 = vsub.f32 %v505, %v616
    %v673 = vsub.f32 %v510, %v619
    %v674 = vsub.f32 %v513, %v622
    %v675 = vsub.f32 %v518, %v625
    %v676 = vsub.f32 %v521, %v628
    %v677 = vsub.f32 %v526, %v631
    %v678 = vsub.f32 %v529, %v634
    %v679 = vsub.f32 %v534, %v637
    %v680 = vsub.f32 %v537, %v640
    %v681 = vsub.f32 %v542, %v643
    %v682 = vsub.f32 %v545, %v646
    %v683 = vsub.f32 %v550, %v649
    %v684 = vsub.f32 %v553, %v652
    %v685 = vmul.f32 %v653, 1.442695
    %v686 = vpow.pop %v685
    %v687 = vmul.f32 %v654, 1.442695
    %v688 = vpow.pop %v687
    %v689 = vmul.f32 %v655, 1.442695
    %v690 = vpow.pop %v689
    %v691 = vmul.f32 %v656, 1.442695
    %v692 = vpow.pop %v691
    %v693 = vmul.f32 %v657, 1.442695
    %v694 = vpow.pop %v693
    %v695 = vmul.f32 %v658, 1.442695
    %v696 = vpow.pop %v695
    %v697 = vmul.f32 %v659, 1.442695
    %v698 = vpow.pop %v697
    %v699 = vmul.f32 %v660, 1.442695
    %v700 = vpow.pop %v699
    %v701 = vmul.f32 %v661, 1.442695
    %v702 = vpow.pop %v701
    %v703 = vmul.f32 %v662, 1.442695
    %v704 = vpow.pop %v703
    %v705 = vmul.f32 %v663, 1.442695
    %v706 = vpow.pop %v705
    %v707 = vmul.f32 %v664, 1.442695
    %v708 = vpow.pop %v707
    %v709 = vmul.f32 %v665, 1.442695
    %v710 = vpow.pop %v709
    %v711 = vmul.f32 %v666, 1.442695
    %v712 = vpow.pop %v711
    %v713 = vmul.f32 %v667, 1.442695
    %v714 = vpow.pop %v713
    %v715 = vmul.f32 %v668, 1.442695
    %v716 = vpow.pop %v715
    %v717 = vmul.f32 %v669, 1.442695
    %v718 = vpow.pop %v717
    %v719 = vmul.f32 %v670, 1.442695
    %v720 = vpow.pop %v719
    %v721 = vmul.f32 %v671, 1.442695
    %v722 = vpow.pop %v721
    %v723 = vmul.f32 %v672, 1.442695
    %v724 = vpow.pop %v723
    %v725 = vmul.f32 %v673, 1.442695
    %v726 = vpow.pop %v725
    %v727 = vmul.f32 %v674, 1.442695
    %v728 = vpow.pop %v727
    %v729 = vmul.f32 %v675, 1.442695
    %v730 = vpow.pop %v729
    %v731 = vmul.f32 %v676, 1.442695
    %v732 = vpow.pop %v731
    %v733 = vmul.f32 %v677, 1.442695
    %v734 = vpow.pop %v733
    %v735 = vmul.f32 %v678, 1.442695
    %v736 = vpow.pop %v735
    %v737 = vmul.f32 %v679, 1.442695
    %v738 = vpow.pop %v737
    %v739 = vmul.f32 %v680, 1.442695
    %v740 = vpow.pop %v739
    %v741 = vmul.f32 %v681, 1.442695
    %v742 = vpow.pop %v741
    %v743 = vmul.f32 %v682, 1.442695
    %v744 = vpow.pop %v743
    %v745 = vmul.f32 %v683, 1.442695
    %v746 = vpow.pop %v745
    %v747 = vmul.f32 %v684, 1.442695
    %v748 = vpow.pop %v747
    %v749 = vsel %vm556, %v686, 0.0
    %750 = vadd.xlane.f32.xlu0 %v749
    %v751 = vpop.xlane.xlu0 %750
    %v752 = vsel %vm556, %v688, 0.0
    %753 = vadd.xlane.f32.xlu0 %v752
    %v754 = vpop.xlane.xlu0 %753
    %v755 = vsel %vm556, %v690, 0.0
    %756 = vadd.xlane.f32.xlu0 %v755
    %v757 = vpop.xlane.xlu0 %756
    %v758 = vsel %vm556, %v692, 0.0
    %759 = vadd.xlane.f32.xlu0 %v758
    %v760 = vpop.xlane.xlu0 %759
    %v761 = vsel %vm556, %v694, 0.0
    %762 = vadd.xlane.f32.xlu0 %v761
    %v763 = vpop.xlane.xlu0 %762
    %v764 = vsel %vm556, %v696, 0.0
    %765 = vadd.xlane.f32.xlu0 %v764
    %v766 = vpop.xlane.xlu0 %765
    %v767 = vsel %vm556, %v698, 0.0
    %768 = vadd.xlane.f32.xlu0 %v767
    %v769 = vpop.xlane.xlu0 %768
    %v770 = vsel %vm556, %v700, 0.0
    %771 = vadd.xlane.f32.xlu0 %v770
    %v772 = vpop.xlane.xlu0 %771
    %v773 = vsel %vm556, %v702, 0.0
    %774 = vadd.xlane.f32.xlu0 %v773
    %v775 = vpop.xlane.xlu0 %774
    %v776 = vsel %vm556, %v704, 0.0
    %777 = vadd.xlane.f32.xlu0 %v776
    %v778 = vpop.xlane.xlu0 %777
    %v779 = vsel %vm556, %v706, 0.0
    %780 = vadd.xlane.f32.xlu0 %v779
    %v781 = vpop.xlane.xlu0 %780
    %v782 = vsel %vm556, %v708, 0.0
    %783 = vadd.xlane.f32.xlu0 %v782
    %v784 = vpop.xlane.xlu0 %783
    %v785 = vsel %vm556, %v710, 0.0
    %786 = vadd.xlane.f32.xlu0 %v785
    %v787 = vpop.xlane.xlu0 %786
    %v788 = vsel %vm556, %v712, 0.0
    %789 = vadd.xlane.f32.xlu0 %v788
    %v790 = vpop.xlane.xlu0 %789
    %v791 = vsel %vm556, %v714, 0.0
    %792 = vadd.xlane.f32.xlu0 %v791
    %v793 = vpop.xlane.xlu0 %792
    %v794 = vsel %vm556, %v716, 0.0
    %795 = vadd.xlane.f32.xlu0 %v794
    %v796 = vpop.xlane.xlu0 %795
    %v797 = vsel %vm556, %v718, 0.0
    %798 = vadd.xlane.f32.xlu0 %v797
    %v799 = vpop.xlane.xlu0 %798
    %v800 = vsel %vm556, %v720, 0.0
    %801 = vadd.xlane.f32.xlu0 %v800
    %v802 = vpop.xlane.xlu0 %801
    %v803 = vsel %vm556, %v722, 0.0
    %804 = vadd.xlane.f32.xlu0 %v803
    %v805 = vpop.xlane.xlu0 %804
    %v806 = vsel %vm556, %v724, 0.0
    %807 = vadd.xlane.f32.xlu0 %v806
    %v808 = vpop.xlane.xlu0 %807
    %v809 = vsel %vm556, %v726, 0.0
    %810 = vadd.xlane.f32.xlu0 %v809
    %v811 = vpop.xlane.xlu0 %810
    %v812 = vsel %vm556, %v728, 0.0
    %813 = vadd.xlane.f32.xlu0 %v812
    %v814 = vpop.xlane.xlu0 %813
    %v815 = vsel %vm556, %v730, 0.0
    %816 = vadd.xlane.f32.xlu0 %v815
    %v817 = vpop.xlane.xlu0 %816
    %v818 = vsel %vm556, %v732, 0.0
    %819 = vadd.xlane.f32.xlu0 %v818
    %v820 = vpop.xlane.xlu0 %819
    %v821 = vsel %vm556, %v734, 0.0
    %822 = vadd.xlane.f32.xlu0 %v821
    %v823 = vpop.xlane.xlu0 %822
    %v824 = vsel %vm556, %v736, 0.0
    %825 = vadd.xlane.f32.xlu0 %v824
    %v826 = vpop.xlane.xlu0 %825
    %v827 = vsel %vm556, %v738, 0.0
    %828 = vadd.xlane.f32.xlu0 %v827
    %v829 = vpop.xlane.xlu0 %828
    %v830 = vsel %vm556, %v740, 0.0
    %831 = vadd.xlane.f32.xlu0 %v830
    %v832 = vpop.xlane.xlu0 %831
    %v833 = vsel %vm556, %v742, 0.0
    %834 = vadd.xlane.f32.xlu0 %v833
    %v835 = vpop.xlane.xlu0 %834
    %v836 = vsel %vm556, %v744, 0.0
    %837 = vadd.xlane.f32.xlu0 %v836
    %v838 = vpop.xlane.xlu0 %837
    %v839 = vsel %vm556, %v746, 0.0
    %840 = vadd.xlane.f32.xlu0 %v839
    %v841 = vpop.xlane.xlu0 %840
    %v842 = vsel %vm556, %v748, 0.0
    %843 = vadd.xlane.f32.xlu0 %v842
    %v844 = vpop.xlane.xlu0 %843
    %v845 = vrcp.pop %v751
    %v846 = vmul.f32 %v686, %v845
    %v847 = vrcp.pop %v754
    %v848 = vmul.f32 %v688, %v847
    %v849 = vrcp.pop %v757
    %v850 = vmul.f32 %v690, %v849
    %v851 = vrcp.pop %v760
    %v852 = vmul.f32 %v692, %v851
    %v853 = vrcp.pop %v763
    %v854 = vmul.f32 %v694, %v853
    %v855 = vrcp.pop %v766
    %v856 = vmul.f32 %v696, %v855
    %v857 = vrcp.pop %v769
    %v858 = vmul.f32 %v698, %v857
    %v859 = vrcp.pop %v772
    %v860 = vmul.f32 %v700, %v859
    %v861 = vrcp.pop %v775
    %v862 = vmul.f32 %v702, %v861
    %v863 = vrcp.pop %v778
    %v864 = vmul.f32 %v704, %v863
    %v865 = vrcp.pop %v781
    %v866 = vmul.f32 %v706, %v865
    %v867 = vrcp.pop %v784
    %v868 = vmul.f32 %v708, %v867
    %v869 = vrcp.pop %v787
    %v870 = vmul.f32 %v710, %v869
    %v871 = vrcp.pop %v790
    %v872 = vmul.f32 %v712, %v871
    %v873 = vrcp.pop %v793
    %v874 = vmul.f32 %v714, %v873
    %v875 = vrcp.pop %v796
    %v876 = vmul.f32 %v716, %v875
    %v877 = vrcp.pop %v799
    %v878 = vmul.f32 %v718, %v877
    %v879 = vrcp.pop %v802
    %v880 = vmul.f32 %v720, %v879
    %v881 = vrcp.pop %v805
    %v882 = vmul.f32 %v722, %v881
    %v883 = vrcp.pop %v808
    %v884 = vmul.f32 %v724, %v883
    %v885 = vrcp.pop %v811
    %v886 = vmul.f32 %v726, %v885
    %v887 = vrcp.pop %v814
    %v888 = vmul.f32 %v728, %v887
    %v889 = vrcp.pop %v817
    %v890 = vmul.f32 %v730, %v889
    %v891 = vrcp.pop %v820
    %v892 = vmul.f32 %v732, %v891
    %v893 = vrcp.pop %v823
    %v894 = vmul.f32 %v734, %v893
    %v895 = vrcp.pop %v826
    %v896 = vmul.f32 %v736, %v895
    %v897 = vrcp.pop %v829
    %v898 = vmul.f32 %v738, %v897
    %v899 = vrcp.pop %v832
    %v900 = vmul.f32 %v740, %v899
    %v901 = vrcp.pop %v835
    %v902 = vmul.f32 %v742, %v901
    %v903 = vrcp.pop %v838
    %v904 = vmul.f32 %v744, %v903
    %v905 = vrcp.pop %v841
    %v906 = vmul.f32 %v746, %v905
    %v907 = vrcp.pop %v844
    %v908 = vmul.f32 %v748, %v907
    %v909 = vpack.c.bf16 %v848, %v846
    %v910 = vpack.c.bf16 %v852, %v850
    %v911 = vpack.c.bf16 %v856, %v854
    %v912 = vpack.c.bf16 %v860, %v858
    %v913 = vpack.c.bf16 %v864, %v862
    %v914 = vpack.c.bf16 %v868, %v866
    %v915 = vpack.c.bf16 %v872, %v870
    %v916 = vpack.c.bf16 %v876, %v874
    %v917 = vpack.c.bf16 %v880, %v878
    %v918 = vpack.c.bf16 %v884, %v882
    %v919 = vpack.c.bf16 %v888, %v886
    %v920 = vpack.c.bf16 %v892, %v890
    %v921 = vpack.c.bf16 %v896, %v894
    %v922 = vpack.c.bf16 %v900, %v898
    %v923 = vpack.c.bf16 %v904, %v902
    %v924 = vpack.c.bf16 %v908, %v906
    %v926 = vsel %vm556, %v306, 0
    %v929 = vsel %vm556, %v307, 0
    %v932 = vsel %vm556, %v909, 0
    %v935 = vsel %vm556, %v910, 0
    %v938 = vsel %vm556, %v911, 0
    %v941 = vsel %vm556, %v912, 0
    %v944 = vsel %vm556, %v913, 0
    %v947 = vsel %vm556, %v914, 0
    %v950 = vsel %vm556, %v915, 0
    %v953 = vsel %vm556, %v916, 0
    %v956 = vsel %vm556, %v917, 0
    %v959 = vsel %vm556, %v918, 0
    %v962 = vsel %vm556, %v919, 0
    %v965 = vsel %vm556, %v920, 0
    %v968 = vsel %vm556, %v921, 0
    %v971 = vsel %vm556, %v922, 0
    %v974 = vsel %vm556, %v923, 0
    %v977 = vsel %vm556, %v924, 0
    %979 = vmatprep.subr.bf16.mxu0 0
    %980 = vmatpush1.bf16.xpose.msra.mxu0 %v953
    %981 = vmatprep.subr.bf16.mxu0 0
    %982 = vmatpush1.bf16.xpose.msra.mxu0 %v950
    %983 = vmatprep.subr.bf16.mxu0 0
    %984 = vmatpush1.bf16.xpose.msra.mxu0 %v947
    %985 = vmatprep.subr.bf16.mxu0 0
    %986 = vmatpush1.bf16.xpose.msra.mxu0 %v944
    %987 = vmatprep.subr.bf16.mxu0 0
    %988 = vmatpush1.bf16.xpose.msra.mxu0 %v941
    %989 = vmatprep.subr.bf16.mxu0 0
    %990 = vmatpush1.bf16.xpose.msra.mxu0 %v938
    %991 = vmatprep.subr.bf16.mxu0 0
    %992 = vmatpush1.bf16.xpose.msra.mxu0 %v935
    %993 = vmatprep.subr.bf16.mxu0 0
    %994 = vmatpush1.bf16.xpose.msra.mxu0 %v932
    %995 = vmatprep.subr.bf16.mxu0 0
    %996 = vmatpush2.bf16.xpose.msra.mxu0 %v977
    %997 = vmatprep.subr.bf16.mxu0 0
    %998 = vmatpush2.bf16.xpose.msra.mxu0 %v974
    %999 = vmatprep.subr.bf16.mxu0 0
    %1000 = vmatpush2.bf16.xpose.msra.mxu0 %v971
    %1001 = vmatprep.subr.bf16.mxu0 0
    %1002 = vmatpush2.bf16.xpose.msra.mxu0 %v968
    %1003 = vmatprep.subr.bf16.mxu0 0
    %1004 = vmatpush2.bf16.xpose.msra.mxu0 %v965
    %1005 = vmatprep.subr.bf16.mxu0 0
    %1006 = vmatpush2.bf16.xpose.msra.mxu0 %v962
    %1007 = vmatprep.subr.bf16.mxu0 0
    %1008 = vmatpush2.bf16.xpose.msra.mxu0 %v959
    %1009 = vmatprep.subr.bf16.mxu0 0
    %1010 = vmatpush2.bf16.xpose.msra.mxu0 %v956
    %1011 = vmatprep.mubr.bf16.mxu0 0
    %1012 = vmatmul.mubr.bf16.gmra.mxu0 %v926
    %v1013 = vpop.f32.mrf.mxu0
    %v1014 = vadd.f32 0.0, %v1013
    %v1015 = vpop.f32.mrf.mxu0
    %v1016 = vadd.f32 0.0, %v1015
    %v1017 = vpop.f32.mrf.mxu0
    %v1018 = vadd.f32 0.0, %v1017
    %v1019 = vpop.f32.mrf.mxu0
    %v1020 = vadd.f32 0.0, %v1019
    %1021 = vmatprep.mubr.bf16.mxu0 0
    %1022 = vmatmul.mubr.bf16.gmra.mxu0 %v929
    %v1023 = vpop.f32.mrf.mxu0
    %v1024 = vadd.f32 0.0, %v1023
    %v1025 = vpop.f32.mrf.mxu0
    %v1026 = vadd.f32 0.0, %v1025
    %v1027 = vpop.f32.mrf.mxu0
    %v1028 = vadd.f32 0.0, %v1027
    %v1029 = vpop.f32.mrf.mxu0
    %v1030 = vadd.f32 0.0, %v1029
    %1031 = vdwg.mxu0
    %v1032 = vstv %s64
    %v1033 = vmul.f32 %v1032, %v1014
    %v1034 = vmul.f32 %v1032, %v1016
    %v1035 = vmul.f32 %v1032, %v1018
    %v1036 = vmul.f32 %v1032, %v1020
    %v1037 = vmul.f32 %v1032, %v1024
    %v1038 = vmul.f32 %v1032, %v1026
    %v1039 = vmul.f32 %v1032, %v1028
    %v1040 = vmul.f32 %v1032, %v1030
    %v1041 = vadd.f32 %v71, %v1033
    %v1042 = vadd.f32 %v72, %v1034
    %v1043 = vadd.f32 %v73, %v1035
    %v1044 = vadd.f32 %v74, %v1036
    %v1045 = vadd.f32 %v75, %v1037
    %v1046 = vadd.f32 %v76, %v1038
    %v1047 = vadd.f32 %v77, %v1039
    %v1048 = vadd.f32 %v78, %v1040
    %1049 = vst [vmem:[#allocation9] sm:$0xff] %v1041
    %1050 = vst [vmem:[#allocation9 + $0x8] sm:$0xff] %v1042
    %1051 = vst [vmem:[#allocation9 + $0x10] sm:$0xff] %v1043
    %1052 = vst [vmem:[#allocation9 + $0x18] sm:$0xff] %v1044
    %1053 = vst [vmem:[#allocation9 + $0x20] sm:$0xff] %v1045
    %1054 = vst [vmem:[#allocation9 + $0x28] sm:$0xff] %v1046
    %1055 = vst [vmem:[#allocation9 + $0x30] sm:$0xff] %v1047
    %1056 = vst [vmem:[#allocation9 + $0x38] sm:$0xff] %v1048
    %s1057 = scalar_lea.vmem [#allocation3], 64
    %v1058 = vld [vmem:[%s1057] sm:$0xff]
    %v1059 = vld [vmem:[%s1057 + $0x8] sm:$0xff]
    %v1060 = vld [vmem:[%s1057 + $0x10] sm:$0xff]
    %v1061 = vld [vmem:[%s1057 + $0x18] sm:$0xff]
    %v1062 = vld [vmem:[%s1057 + $0x20] sm:$0xff]
    %v1063 = vld [vmem:[%s1057 + $0x28] sm:$0xff]
    %v1064 = vld [vmem:[%s1057 + $0x30] sm:$0xff]
    %v1065 = vld [vmem:[%s1057 + $0x38] sm:$0xff]
    %v1066 = vpack.c.bf16 %v1060, %v1058
    %v1067 = vpack.c.bf16 %v1061, %v1059
    %v1068 = vpack.c.bf16 %v1064, %v1062
    %v1069 = vpack.c.bf16 %v1065, %v1063
    %1070 = vmatprep.subr.bf16.mxu0 0
    %1071 = vmatpush1.bf16.msra.mxu0 0
    %1072 = vmatprep.subr.bf16.mxu0 0
    %1073 = vmatpush1.bf16.msra.mxu0 0
    %1074 = vmatprep.subr.bf16.mxu0 0
    %1075 = vmatpush1.bf16.msra.mxu0 0
    %1076 = vmatprep.subr.bf16.mxu0 0
    %1077 = vmatpush1.bf16.msra.mxu0 0
    %1078 = vmatprep.subr.bf16.mxu0 0
    %1079 = vmatpush1.bf16.msra.mxu0 0
    %1080 = vmatprep.subr.bf16.mxu0 0
    %1081 = vmatpush1.bf16.msra.mxu0 0
    %1082 = vmatprep.subr.bf16.mxu0 %v1069
    %1083 = vmatpush1.bf16.msra.mxu0 %v1068
    %1084 = vmatprep.subr.bf16.mxu0 %v1067
    %1085 = vmatpush1.bf16.msra.mxu0 %v1066
    %1086 = vmatprep.subr.bf16.mxu0 0
    %1087 = vmatpush2.bf16.msra.mxu0 0
    %1088 = vmatprep.subr.bf16.mxu0 0
    %1089 = vmatpush2.bf16.msra.mxu0 0
    %1090 = vmatprep.subr.bf16.mxu0 0
    %1091 = vmatpush2.bf16.msra.mxu0 0
    %1092 = vmatprep.subr.bf16.mxu0 0
    %1093 = vmatpush2.bf16.msra.mxu0 0
    %1094 = vmatprep.subr.bf16.mxu0 0
    %1095 = vmatpush2.bf16.msra.mxu0 0
    %1096 = vmatprep.subr.bf16.mxu0 0
    %1097 = vmatpush2.bf16.msra.mxu0 0
    %1098 = vmatprep.subr.bf16.mxu0 0
    %1099 = vmatpush2.bf16.msra.mxu0 0
    %1100 = vmatprep.subr.bf16.mxu0 0
    %1101 = vmatpush2.bf16.msra.mxu0 0
    %1102 = vmatprep.mubr.bf16.mxu0 0
    %1103 = vmatmul.mubr.bf16.gmra.mxu0 %v85
    %v1104 = vpop.f32.mrf.mxu0
    %v1105 = vadd.f32 0.0, %v1104
    %v1106 = vpop.f32.mrf.mxu0
    %v1107 = vadd.f32 0.0, %v1106
    %v1108 = vpop.f32.mrf.mxu0
    %v1109 = vpop.f32.mrf.mxu0
    %1110 = vdwg.mxu0
    %1111 = vmatprep.subr.bf16.mxu0 0
    %1112 = vmatpush1.bf16.msra.mxu0 0
    %1113 = vmatprep.subr.bf16.mxu0 0
    %1114 = vmatpush1.bf16.msra.mxu0 0
    %1115 = vmatprep.subr.bf16.mxu0 0
    %1116 = vmatpush1.bf16.msra.mxu0 0
    %1117 = vmatprep.subr.bf16.mxu0 0
    %1118 = vmatpush1.bf16.msra.mxu0 0
    %1119 = vmatprep.subr.bf16.mxu0 0
    %1120 = vmatpush1.bf16.msra.mxu0 0
    %1121 = vmatprep.subr.bf16.mxu0 0
    %1122 = vmatpush1.bf16.msra.mxu0 0
    %1123 = vmatprep.subr.bf16.mxu0 %v1069
    %1124 = vmatpush1.bf16.msra.mxu0 %v1068
    %1125 = vmatprep.subr.bf16.mxu0 %v1067
    %1126 = vmatpush1.bf16.msra.mxu0 %v1066
    %1127 = vmatprep.subr.bf16.mxu0 0
    %1128 = vmatpush2.bf16.msra.mxu0 0
    %1129 = vmatprep.subr.bf16.mxu0 0
    %1130 = vmatpush2.bf16.msra.mxu0 0
    %1131 = vmatprep.subr.bf16.mxu0 0
    %1132 = vmatpush2.bf16.msra.mxu0 0
    %1133 = vmatprep.subr.bf16.mxu0 0
    %1134 = vmatpush2.bf16.msra.mxu0 0
    %1135 = vmatprep.subr.bf16.mxu0 0
    %1136 = vmatpush2.bf16.msra.mxu0 0
    %1137 = vmatprep.subr.bf16.mxu0 0
    %1138 = vmatpush2.bf16.msra.mxu0 0
    %1139 = vmatprep.subr.bf16.mxu0 0
    %1140 = vmatpush2.bf16.msra.mxu0 0
    %1141 = vmatprep.subr.bf16.mxu0 0
    %1142 = vmatpush2.bf16.msra.mxu0 0
    %1143 = vmatprep.mubr.bf16.mxu0 0
    %1144 = vmatmul.mubr.bf16.gmra.mxu0 %v137
    %v1145 = vpop.f32.mrf.mxu0
    %v1146 = vadd.f32 0.0, %v1145
    %v1147 = vpop.f32.mrf.mxu0
    %v1148 = vadd.f32 0.0, %v1147
    %v1149 = vpop.f32.mrf.mxu0
    %v1150 = vadd.f32 0.0, %v1149
    %v1151 = vpop.f32.mrf.mxu0
    %v1152 = vadd.f32 0.0, %v1151
    %1153 = vmatprep.mubr.bf16.mxu0 0
    %1154 = vmatmul.mubr.bf16.gmra.mxu0 %v140
    %v1155 = vpop.f32.mrf.mxu0
    %v1156 = vadd.f32 0.0, %v1155
    %v1157 = vpop.f32.mrf.mxu0
    %v1158 = vadd.f32 0.0, %v1157
    %v1159 = vpop.f32.mrf.mxu0
    %v1160 = vpop.f32.mrf.mxu0
    %1161 = vdwg.mxu0
    %1165 = vrot.lane.b32.xlu0 %v1146, 64
    %v1166 = vpop.permute.xlu0 %1165
    %1167 = vrot.lane.b32.xlu0 %v1150, 64
    %v1168 = vpop.permute.xlu0 %1167
    %1169 = vrot.lane.b32.xlu0 %v1156, 64
    %v1170 = vpop.permute.xlu0 %1169
    %v1174 = vmax.f32 %v1146, %v1166
    %v1175 = vmax.f32 %v1150, %v1168
    %v1176 = vmax.f32 %v1156, %v1170
    %1180 = vrot.lane.b32.xlu0 %v1148, 64
    %v1181 = vpop.permute.xlu0 %1180
    %1182 = vrot.lane.b32.xlu0 %v1152, 64
    %v1183 = vpop.permute.xlu0 %1182
    %1184 = vrot.lane.b32.xlu0 %v1158, 64
    %v1185 = vpop.permute.xlu0 %1184
    %v1189 = vmax.f32 %v1148, %v1181
    %v1190 = vmax.f32 %v1152, %v1183
    %v1191 = vmax.f32 %v1158, %v1185
    %v1192 = vmax.f32 %v1174, %v1189
    %v1193 = vmax.f32 %v1175, %v1190
    %v1194 = vmax.f32 %v1176, %v1191
    %v1195 = vpack.c.bf16 %v1193, %v1192
    %v1196 = vpack.c.bf16 %v1194, %v1194
    %1197 = vmatprep.subr.bf16.mxu0 0
    %1198 = vmatpush1.bf16.msra.mxu0 0
    %1199 = vmatprep.subr.bf16.mxu0 0
    %1200 = vmatpush1.bf16.msra.mxu0 0
    %1201 = vmatprep.subr.bf16.mxu0 0
    %1202 = vmatpush1.bf16.msra.mxu0 0
    %1203 = vmatprep.subr.bf16.mxu0 0
    %1204 = vmatpush1.bf16.msra.mxu0 0
    %1205 = vmatprep.subr.bf16.mxu0 0
    %1206 = vmatpush1.bf16.msra.mxu0 0
    %1207 = vmatprep.subr.bf16.mxu0 0
    %1208 = vmatpush1.bf16.msra.mxu0 0
    %1209 = vmatprep.subr.bf16.mxu0 0
    %1210 = vmatpush1.bf16.msra.mxu0 0
    %1211 = vmatprep.subr.bf16.mxu0 0
    %1212 = vmatpush1.bf16.msra.mxu0 %v1195
    %1213 = vmatprep.subr.bf16.mxu0 0
    %1214 = vmatpush2.bf16.msra.mxu0 0
    %1215 = vmatprep.subr.bf16.mxu0 0
    %1216 = vmatpush2.bf16.msra.mxu0 0
    %1217 = vmatprep.subr.bf16.mxu0 0
    %1218 = vmatpush2.bf16.msra.mxu0 0
    %1219 = vmatprep.subr.bf16.mxu0 0
    %1220 = vmatpush2.bf16.msra.mxu0 0
    %1221 = vmatprep.subr.bf16.mxu0 0
    %1222 = vmatpush2.bf16.msra.mxu0 0
    %1223 = vmatprep.subr.bf16.mxu0 0
    %1224 = vmatpush2.bf16.msra.mxu0 0
    %1225 = vmatprep.subr.bf16.mxu0 0
    %1226 = vmatpush2.bf16.msra.mxu0 0
    %1227 = vmatprep.subr.bf16.mxu0 0
    %1228 = vmatpush2.bf16.msra.mxu0 0
    %1229 = vmatprep.mubr.bf16.mxu0 0
    %1230 = vmatmul.mubr.bf16.gmra.mxu0 %v252
    %v1231 = vpop.f32.mrf.mxu0
    %v1232 = vadd.f32 0.0, %v1231
    %v1233 = vpop.f32.mrf.mxu0
    %v1234 = vpop.f32.mrf.mxu0
    %v1235 = vadd.f32 0.0, %v1234
    %v1236 = vpop.f32.mrf.mxu0
    %1237 = vmatprep.mubr.bf16.mxu0 0
    %1238 = vmatmul.mubr.bf16.gmra.mxu0 %v255
    %v1239 = vpop.f32.mrf.mxu0
    %v1240 = vadd.f32 0.0, %v1239
    %v1241 = vpop.f32.mrf.mxu0
    %v1242 = vpop.f32.mrf.mxu0
    %v1243 = vadd.f32 0.0, %v1242
    %v1244 = vpop.f32.mrf.mxu0
    %1245 = vdwg.mxu0
    %v1246 = vpack.c.bf16 %v1235, %v1232
    %v1247 = vpack.c.bf16 %v1243, %v1240
    %v1248 = vpack.c.bf16 %v1105, %v1105
    %v1249 = vpack.c.bf16 %v1107, %v1107
    %1250 = vxpose.xlu0.c.b16.start [1/8] %v1248, 128
    %1251 = vxpose.xlu0.c.b16.cont [2/8] 0, 128
    %1252 = vxpose.xlu0.c.b16.cont [3/8] 0, 128
    %1253 = vxpose.xlu0.c.b16.cont [4/8] 0, 128
    %1254 = vxpose.xlu0.c.b16.cont [5/8] 0, 128
    %1255 = vxpose.xlu0.c.b16.cont [6/8] 0, 128
    %1256 = vxpose.xlu0.c.b16.cont [7/8] 0, 128
    %1257 = vxpose.xlu0.c.b16.end [8/8] 0, 128
    %v1258 = vpop.trf.xlu0
    %v1259 = vpop.trf.xlu0
    %v1260 = vpop.trf.xlu0
    %v1261 = vpop.trf.xlu0
    %v1262 = vpop.trf.xlu0
    %v1263 = vpop.trf.xlu0
    %v1264 = vpop.trf.xlu0
    %v1265 = vpop.trf.xlu0
    %1266 = vxpose.xlu0.c.b16.start [1/8] %v1249, 128
    %1267 = vxpose.xlu0.c.b16.cont [2/8] 0, 128
    %1268 = vxpose.xlu0.c.b16.cont [3/8] 0, 128
    %1269 = vxpose.xlu0.c.b16.cont [4/8] 0, 128
    %1270 = vxpose.xlu0.c.b16.cont [5/8] 0, 128
    %1271 = vxpose.xlu0.c.b16.cont [6/8] 0, 128
    %1272 = vxpose.xlu0.c.b16.cont [7/8] 0, 128
    %1273 = vxpose.xlu0.c.b16.end [8/8] 0, 128
    %v1274 = vpop.trf.xlu0
    %v1275 = vpop.trf.xlu0
    %v1276 = vpop.trf.xlu0
    %v1277 = vpop.trf.xlu0
    %v1278 = vpop.trf.xlu0
    %v1279 = vpop.trf.xlu0
    %v1280 = vpop.trf.xlu0
    %v1281 = vpop.trf.xlu0
    %v1283 = vsel %vm342, %v1258, 0
    %v1286 = vsel %vm342, %v1259, 0
    %v1289 = vsel %vm342, %v1260, 0
    %v1292 = vsel %vm342, %v1261, 0
    %v1295 = vsel %vm342, %v1262, 0
    %v1298 = vsel %vm342, %v1263, 0
    %v1301 = vsel %vm342, %v1264, 0
    %v1304 = vsel %vm342, %v1265, 0
    %v1307 = vsel %vm342, %v1274, 0
    %v1310 = vsel %vm342, %v1275, 0
    %v1313 = vsel %vm342, %v1276, 0
    %v1316 = vsel %vm342, %v1277, 0
    %v1319 = vsel %vm342, %v1278, 0
    %v1322 = vsel %vm342, %v1279, 0
    %v1325 = vsel %vm342, %v1280, 0
    %v1328 = vsel %vm342, %v1281, 0
    %v1331 = vsel %vm391, %v1196, 0
    %1333 = vmatprep.subr.bf16.mxu0 0
    %1334 = vmatpush1.bf16.msra.mxu0 0
    %1335 = vmatprep.subr.bf16.mxu0 0
    %1336 = vmatpush1.bf16.msra.mxu0 0
    %1337 = vmatprep.subr.bf16.mxu0 0
    %1338 = vmatpush1.bf16.msra.mxu0 0
    %1339 = vmatprep.subr.bf16.mxu0 0
    %1340 = vmatpush1.bf16.msra.mxu0 0
    %1341 = vmatprep.subr.bf16.mxu0 0
    %1342 = vmatpush1.bf16.msra.mxu0 0
    %1343 = vmatprep.subr.bf16.mxu0 0
    %1344 = vmatpush1.bf16.msra.mxu0 0
    %1345 = vmatprep.subr.bf16.mxu0 0
    %1346 = vmatpush1.bf16.msra.mxu0 0
    %1347 = vmatprep.subr.bf16.mxu0 0
    %1348 = vmatpush1.bf16.msra.mxu0 %v1331
    %1349 = vmatprep.subr.bf16.mxu0 0
    %1350 = vmatpush2.bf16.msra.mxu0 0
    %1351 = vmatprep.subr.bf16.mxu0 0
    %1352 = vmatpush2.bf16.msra.mxu0 0
    %1353 = vmatprep.subr.bf16.mxu0 0
    %1354 = vmatpush2.bf16.msra.mxu0 0
    %1355 = vmatprep.subr.bf16.mxu0 0
    %1356 = vmatpush2.bf16.msra.mxu0 0
    %1357 = vmatprep.subr.bf16.mxu0 0
    %1358 = vmatpush2.bf16.msra.mxu0 0
    %1359 = vmatprep.subr.bf16.mxu0 0
    %1360 = vmatpush2.bf16.msra.mxu0 0
    %1361 = vmatprep.subr.bf16.mxu0 0
    %1362 = vmatpush2.bf16.msra.mxu0 0
    %1363 = vmatprep.subr.bf16.mxu0 0
    %1364 = vmatpush2.bf16.msra.mxu0 0
    %1365 = vmatprep.mubr.bf16.mxu0 0
    %1366 = vmatmul.mubr.bf16.gmra.mxu0 %v1283
    %v1367 = vpop.f32.mrf.mxu0
    %v1368 = vadd.f32 0.0, %v1367
    %v1369 = vpop.f32.mrf.mxu0
    %v1370 = vpop.f32.mrf.mxu0
    %v1371 = vadd.f32 0.0, %v1370
    %v1372 = vpop.f32.mrf.mxu0
    %1373 = vmatprep.mubr.bf16.mxu0 0
    %1374 = vmatmul.mubr.bf16.gmra.mxu0 %v1286
    %v1375 = vpop.f32.mrf.mxu0
    %v1376 = vadd.f32 0.0, %v1375
    %v1377 = vpop.f32.mrf.mxu0
    %v1378 = vpop.f32.mrf.mxu0
    %v1379 = vadd.f32 0.0, %v1378
    %v1380 = vpop.f32.mrf.mxu0
    %1381 = vmatprep.mubr.bf16.mxu0 0
    %1382 = vmatmul.mubr.bf16.gmra.mxu0 %v1289
    %v1383 = vpop.f32.mrf.mxu0
    %v1384 = vadd.f32 0.0, %v1383
    %v1385 = vpop.f32.mrf.mxu0
    %v1386 = vpop.f32.mrf.mxu0
    %v1387 = vadd.f32 0.0, %v1386
    %v1388 = vpop.f32.mrf.mxu0
    %1389 = vmatprep.mubr.bf16.mxu0 0
    %1390 = vmatmul.mubr.bf16.gmra.mxu0 %v1292
    %v1391 = vpop.f32.mrf.mxu0
    %v1392 = vadd.f32 0.0, %v1391
    %v1393 = vpop.f32.mrf.mxu0
    %v1394 = vpop.f32.mrf.mxu0
    %v1395 = vadd.f32 0.0, %v1394
    %v1396 = vpop.f32.mrf.mxu0
    %1397 = vmatprep.mubr.bf16.mxu0 0
    %1398 = vmatmul.mubr.bf16.gmra.mxu0 %v1295
    %v1399 = vpop.f32.mrf.mxu0
    %v1400 = vadd.f32 0.0, %v1399
    %v1401 = vpop.f32.mrf.mxu0
    %v1402 = vpop.f32.mrf.mxu0
    %v1403 = vadd.f32 0.0, %v1402
    %v1404 = vpop.f32.mrf.mxu0
    %1405 = vmatprep.mubr.bf16.mxu0 0
    %1406 = vmatmul.mubr.bf16.gmra.mxu0 %v1298
    %v1407 = vpop.f32.mrf.mxu0
    %v1408 = vadd.f32 0.0, %v1407
    %v1409 = vpop.f32.mrf.mxu0
    %v1410 = vpop.f32.mrf.mxu0
    %v1411 = vadd.f32 0.0, %v1410
    %v1412 = vpop.f32.mrf.mxu0
    %1413 = vmatprep.mubr.bf16.mxu0 0
    %1414 = vmatmul.mubr.bf16.gmra.mxu0 %v1301
    %v1415 = vpop.f32.mrf.mxu0
    %v1416 = vadd.f32 0.0, %v1415
    %v1417 = vpop.f32.mrf.mxu0
    %v1418 = vpop.f32.mrf.mxu0
    %v1419 = vadd.f32 0.0, %v1418
    %v1420 = vpop.f32.mrf.mxu0
    %1421 = vmatprep.mubr.bf16.mxu0 0
    %1422 = vmatmul.mubr.bf16.gmra.mxu0 %v1304
    %v1423 = vpop.f32.mrf.mxu0
    %v1424 = vadd.f32 0.0, %v1423
    %v1425 = vpop.f32.mrf.mxu0
    %v1426 = vpop.f32.mrf.mxu0
    %v1427 = vadd.f32 0.0, %v1426
    %v1428 = vpop.f32.mrf.mxu0
    %1429 = vmatprep.mubr.bf16.mxu0 0
    %1430 = vmatmul.mubr.bf16.gmra.mxu0 %v1307
    %v1431 = vpop.f32.mrf.mxu0
    %v1432 = vadd.f32 0.0, %v1431
    %v1433 = vpop.f32.mrf.mxu0
    %v1434 = vpop.f32.mrf.mxu0
    %v1435 = vadd.f32 0.0, %v1434
    %v1436 = vpop.f32.mrf.mxu0
    %1437 = vmatprep.mubr.bf16.mxu0 0
    %1438 = vmatmul.mubr.bf16.gmra.mxu0 %v1310
    %v1439 = vpop.f32.mrf.mxu0
    %v1440 = vadd.f32 0.0, %v1439
    %v1441 = vpop.f32.mrf.mxu0
    %v1442 = vpop.f32.mrf.mxu0
    %v1443 = vadd.f32 0.0, %v1442
    %v1444 = vpop.f32.mrf.mxu0
    %1445 = vmatprep.mubr.bf16.mxu0 0
    %1446 = vmatmul.mubr.bf16.gmra.mxu0 %v1313
    %v1447 = vpop.f32.mrf.mxu0
    %v1448 = vadd.f32 0.0, %v1447
    %v1449 = vpop.f32.mrf.mxu0
    %v1450 = vpop.f32.mrf.mxu0
    %v1451 = vadd.f32 0.0, %v1450
    %v1452 = vpop.f32.mrf.mxu0
    %1453 = vmatprep.mubr.bf16.mxu0 0
    %1454 = vmatmul.mubr.bf16.gmra.mxu0 %v1316
    %v1455 = vpop.f32.mrf.mxu0
    %v1456 = vadd.f32 0.0, %v1455
    %v1457 = vpop.f32.mrf.mxu0
    %v1458 = vpop.f32.mrf.mxu0
    %v1459 = vadd.f32 0.0, %v1458
    %v1460 = vpop.f32.mrf.mxu0
    %1461 = vmatprep.mubr.bf16.mxu0 0
    %1462 = vmatmul.mubr.bf16.gmra.mxu0 %v1319
    %v1463 = vpop.f32.mrf.mxu0
    %v1464 = vadd.f32 0.0, %v1463
    %v1465 = vpop.f32.mrf.mxu0
    %v1466 = vpop.f32.mrf.mxu0
    %v1467 = vadd.f32 0.0, %v1466
    %v1468 = vpop.f32.mrf.mxu0
    %1469 = vmatprep.mubr.bf16.mxu0 0
    %1470 = vmatmul.mubr.bf16.gmra.mxu0 %v1322
    %v1471 = vpop.f32.mrf.mxu0
    %v1472 = vadd.f32 0.0, %v1471
    %v1473 = vpop.f32.mrf.mxu0
    %v1474 = vpop.f32.mrf.mxu0
    %v1475 = vadd.f32 0.0, %v1474
    %v1476 = vpop.f32.mrf.mxu0
    %1477 = vmatprep.mubr.bf16.mxu0 0
    %1478 = vmatmul.mubr.bf16.gmra.mxu0 %v1325
    %v1479 = vpop.f32.mrf.mxu0
    %v1480 = vadd.f32 0.0, %v1479
    %v1481 = vpop.f32.mrf.mxu0
    %v1482 = vpop.f32.mrf.mxu0
    %v1483 = vadd.f32 0.0, %v1482
    %v1484 = vpop.f32.mrf.mxu0
    %1485 = vmatprep.mubr.bf16.mxu0 0
    %1486 = vmatmul.mubr.bf16.gmra.mxu0 %v1328
    %v1487 = vpop.f32.mrf.mxu0
    %v1488 = vadd.f32 0.0, %v1487
    %v1489 = vpop.f32.mrf.mxu0
    %v1490 = vpop.f32.mrf.mxu0
    %v1491 = vadd.f32 0.0, %v1490
    %v1492 = vpop.f32.mrf.mxu0
    %1493 = vdwg.mxu0
    %v1494 = vsel %vm556, %v1368, -inf
    %1495 = vmax.xlane.f32.xlu0 %v1494
    %v1496 = vpop.xlane.xlu0 %1495
    %v1497 = vsel %vm556, %v1371, -inf
    %1498 = vmax.xlane.f32.xlu0 %v1497
    %v1499 = vpop.xlane.xlu0 %1498
    %v1500 = vsel %vm556, %v1376, -inf
    %1501 = vmax.xlane.f32.xlu0 %v1500
    %v1502 = vpop.xlane.xlu0 %1501
    %v1503 = vsel %vm556, %v1379, -inf
    %1504 = vmax.xlane.f32.xlu0 %v1503
    %v1505 = vpop.xlane.xlu0 %1504
    %v1506 = vsel %vm556, %v1384, -inf
    %1507 = vmax.xlane.f32.xlu0 %v1506
    %v1508 = vpop.xlane.xlu0 %1507
    %v1509 = vsel %vm556, %v1387, -inf
    %1510 = vmax.xlane.f32.xlu0 %v1509
    %v1511 = vpop.xlane.xlu0 %1510
    %v1512 = vsel %vm556, %v1392, -inf
    %1513 = vmax.xlane.f32.xlu0 %v1512
    %v1514 = vpop.xlane.xlu0 %1513
    %v1515 = vsel %vm556, %v1395, -inf
    %1516 = vmax.xlane.f32.xlu0 %v1515
    %v1517 = vpop.xlane.xlu0 %1516
    %v1518 = vsel %vm556, %v1400, -inf
    %1519 = vmax.xlane.f32.xlu0 %v1518
    %v1520 = vpop.xlane.xlu0 %1519
    %v1521 = vsel %vm556, %v1403, -inf
    %1522 = vmax.xlane.f32.xlu0 %v1521
    %v1523 = vpop.xlane.xlu0 %1522
    %v1524 = vsel %vm556, %v1408, -inf
    %1525 = vmax.xlane.f32.xlu0 %v1524
    %v1526 = vpop.xlane.xlu0 %1525
    %v1527 = vsel %vm556, %v1411, -inf
    %1528 = vmax.xlane.f32.xlu0 %v1527
    %v1529 = vpop.xlane.xlu0 %1528
    %v1530 = vsel %vm556, %v1416, -inf
    %1531 = vmax.xlane.f32.xlu0 %v1530
    %v1532 = vpop.xlane.xlu0 %1531
    %v1533 = vsel %vm556, %v1419, -inf
    %1534 = vmax.xlane.f32.xlu0 %v1533
    %v1535 = vpop.xlane.xlu0 %1534
    %v1536 = vsel %vm556, %v1424, -inf
    %1537 = vmax.xlane.f32.xlu0 %v1536
    %v1538 = vpop.xlane.xlu0 %1537
    %v1539 = vsel %vm556, %v1427, -inf
    %1540 = vmax.xlane.f32.xlu0 %v1539
    %v1541 = vpop.xlane.xlu0 %1540
    %v1542 = vsel %vm556, %v1432, -inf
    %1543 = vmax.xlane.f32.xlu0 %v1542
    %v1544 = vpop.xlane.xlu0 %1543
    %v1545 = vsel %vm556, %v1435, -inf
    %1546 = vmax.xlane.f32.xlu0 %v1545
    %v1547 = vpop.xlane.xlu0 %1546
    %v1548 = vsel %vm556, %v1440, -inf
    %1549 = vmax.xlane.f32.xlu0 %v1548
    %v1550 = vpop.xlane.xlu0 %1549
    %v1551 = vsel %vm556, %v1443, -inf
    %1552 = vmax.xlane.f32.xlu0 %v1551
    %v1553 = vpop.xlane.xlu0 %1552
    %v1554 = vsel %vm556, %v1448, -inf
    %1555 = vmax.xlane.f32.xlu0 %v1554
    %v1556 = vpop.xlane.xlu0 %1555
    %v1557 = vsel %vm556, %v1451, -inf
    %1558 = vmax.xlane.f32.xlu0 %v1557
    %v1559 = vpop.xlane.xlu0 %1558
    %v1560 = vsel %vm556, %v1456, -inf
    %1561 = vmax.xlane.f32.xlu0 %v1560
    %v1562 = vpop.xlane.xlu0 %1561
    %v1563 = vsel %vm556, %v1459, -inf
    %1564 = vmax.xlane.f32.xlu0 %v1563
    %v1565 = vpop.xlane.xlu0 %1564
    %v1566 = vsel %vm556, %v1464, -inf
    %1567 = vmax.xlane.f32.xlu0 %v1566
    %v1568 = vpop.xlane.xlu0 %1567
    %v1569 = vsel %vm556, %v1467, -inf
    %1570 = vmax.xlane.f32.xlu0 %v1569
    %v1571 = vpop.xlane.xlu0 %1570
    %v1572 = vsel %vm556, %v1472, -inf
    %1573 = vmax.xlane.f32.xlu0 %v1572
    %v1574 = vpop.xlane.xlu0 %1573
    %v1575 = vsel %vm556, %v1475, -inf
    %1576 = vmax.xlane.f32.xlu0 %v1575
    %v1577 = vpop.xlane.xlu0 %1576
    %v1578 = vsel %vm556, %v1480, -inf
    %1579 = vmax.xlane.f32.xlu0 %v1578
    %v1580 = vpop.xlane.xlu0 %1579
    %v1581 = vsel %vm556, %v1483, -inf
    %1582 = vmax.xlane.f32.xlu0 %v1581
    %v1583 = vpop.xlane.xlu0 %1582
    %v1584 = vsel %vm556, %v1488, -inf
    %1585 = vmax.xlane.f32.xlu0 %v1584
    %v1586 = vpop.xlane.xlu0 %1585
    %v1587 = vsel %vm556, %v1491, -inf
    %1588 = vmax.xlane.f32.xlu0 %v1587
    %v1589 = vpop.xlane.xlu0 %1588
    %v1590 = vsub.f32 %v1368, %v1496
    %v1591 = vsub.f32 %v1371, %v1499
    %v1592 = vsub.f32 %v1376, %v1502
    %v1593 = vsub.f32 %v1379, %v1505
    %v1594 = vsub.f32 %v1384, %v1508
    %v1595 = vsub.f32 %v1387, %v1511
    %v1596 = vsub.f32 %v1392, %v1514
    %v1597 = vsub.f32 %v1395, %v1517
    %v1598 = vsub.f32 %v1400, %v1520
    %v1599 = vsub.f32 %v1403, %v1523
    %v1600 = vsub.f32 %v1408, %v1526
    %v1601 = vsub.f32 %v1411, %v1529
    %v1602 = vsub.f32 %v1416, %v1532
    %v1603 = vsub.f32 %v1419, %v1535
    %v1604 = vsub.f32 %v1424, %v1538
    %v1605 = vsub.f32 %v1427, %v1541
    %v1606 = vsub.f32 %v1432, %v1544
    %v1607 = vsub.f32 %v1435, %v1547
    %v1608 = vsub.f32 %v1440, %v1550
    %v1609 = vsub.f32 %v1443, %v1553
    %v1610 = vsub.f32 %v1448, %v1556
    %v1611 = vsub.f32 %v1451, %v1559
    %v1612 = vsub.f32 %v1456, %v1562
    %v1613 = vsub.f32 %v1459, %v1565
    %v1614 = vsub.f32 %v1464, %v1568
    %v1615 = vsub.f32 %v1467, %v1571
    %v1616 = vsub.f32 %v1472, %v1574
    %v1617 = vsub.f32 %v1475, %v1577
    %v1618 = vsub.f32 %v1480, %v1580
    %v1619 = vsub.f32 %v1483, %v1583
    %v1620 = vsub.f32 %v1488, %v1586
    %v1621 = vsub.f32 %v1491, %v1589
    %v1622 = vmul.f32 %v1590, 1.442695
    %v1623 = vpow.pop %v1622
    %v1624 = vmul.f32 %v1591, 1.442695
    %v1625 = vpow.pop %v1624
    %v1626 = vmul.f32 %v1592, 1.442695
    %v1627 = vpow.pop %v1626
    %v1628 = vmul.f32 %v1593, 1.442695
    %v1629 = vpow.pop %v1628
    %v1630 = vmul.f32 %v1594, 1.442695
    %v1631 = vpow.pop %v1630
    %v1632 = vmul.f32 %v1595, 1.442695
    %v1633 = vpow.pop %v1632
    %v1634 = vmul.f32 %v1596, 1.442695
    %v1635 = vpow.pop %v1634
    %v1636 = vmul.f32 %v1597, 1.442695
    %v1637 = vpow.pop %v1636
    %v1638 = vmul.f32 %v1598, 1.442695
    %v1639 = vpow.pop %v1638
    %v1640 = vmul.f32 %v1599, 1.442695
    %v1641 = vpow.pop %v1640
    %v1642 = vmul.f32 %v1600, 1.442695
    %v1643 = vpow.pop %v1642
    %v1644 = vmul.f32 %v1601, 1.442695
    %v1645 = vpow.pop %v1644
    %v1646 = vmul.f32 %v1602, 1.442695
    %v1647 = vpow.pop %v1646
    %v1648 = vmul.f32 %v1603, 1.442695
    %v1649 = vpow.pop %v1648
    %v1650 = vmul.f32 %v1604, 1.442695
    %v1651 = vpow.pop %v1650
    %v1652 = vmul.f32 %v1605, 1.442695
    %v1653 = vpow.pop %v1652
    %v1654 = vmul.f32 %v1606, 1.442695
    %v1655 = vpow.pop %v1654
    %v1656 = vmul.f32 %v1607, 1.442695
    %v1657 = vpow.pop %v1656
    %v1658 = vmul.f32 %v1608, 1.442695
    %v1659 = vpow.pop %v1658
    %v1660 = vmul.f32 %v1609, 1.442695
    %v1661 = vpow.pop %v1660
    %v1662 = vmul.f32 %v1610, 1.442695
    %v1663 = vpow.pop %v1662
    %v1664 = vmul.f32 %v1611, 1.442695
    %v1665 = vpow.pop %v1664
    %v1666 = vmul.f32 %v1612, 1.442695
    %v1667 = vpow.pop %v1666
    %v1668 = vmul.f32 %v1613, 1.442695
    %v1669 = vpow.pop %v1668
    %v1670 = vmul.f32 %v1614, 1.442695
    %v1671 = vpow.pop %v1670
    %v1672 = vmul.f32 %v1615, 1.442695
    %v1673 = vpow.pop %v1672
    %v1674 = vmul.f32 %v1616, 1.442695
    %v1675 = vpow.pop %v1674
    %v1676 = vmul.f32 %v1617, 1.442695
    %v1677 = vpow.pop %v1676
    %v1678 = vmul.f32 %v1618, 1.442695
    %v1679 = vpow.pop %v1678
    %v1680 = vmul.f32 %v1619, 1.442695
    %v1681 = vpow.pop %v1680
    %v1682 = vmul.f32 %v1620, 1.442695
    %v1683 = vpow.pop %v1682
    %v1684 = vmul.f32 %v1621, 1.442695
    %v1685 = vpow.pop %v1684
    %v1686 = vsel %vm556, %v1623, 0.0
    %1687 = vadd.xlane.f32.xlu0 %v1686
    %v1688 = vpop.xlane.xlu0 %1687
    %v1689 = vsel %vm556, %v1625, 0.0
    %1690 = vadd.xlane.f32.xlu0 %v1689
    %v1691 = vpop.xlane.xlu0 %1690
    %v1692 = vsel %vm556, %v1627, 0.0
    %1693 = vadd.xlane.f32.xlu0 %v1692
    %v1694 = vpop.xlane.xlu0 %1693
    %v1695 = vsel %vm556, %v1629, 0.0
    %1696 = vadd.xlane.f32.xlu0 %v1695
    %v1697 = vpop.xlane.xlu0 %1696
    %v1698 = vsel %vm556, %v1631, 0.0
    %1699 = vadd.xlane.f32.xlu0 %v1698
    %v1700 = vpop.xlane.xlu0 %1699
    %v1701 = vsel %vm556, %v1633, 0.0
    %1702 = vadd.xlane.f32.xlu0 %v1701
    %v1703 = vpop.xlane.xlu0 %1702
    %v1704 = vsel %vm556, %v1635, 0.0
    %1705 = vadd.xlane.f32.xlu0 %v1704
    %v1706 = vpop.xlane.xlu0 %1705
    %v1707 = vsel %vm556, %v1637, 0.0
    %1708 = vadd.xlane.f32.xlu0 %v1707
    %v1709 = vpop.xlane.xlu0 %1708
    %v1710 = vsel %vm556, %v1639, 0.0
    %1711 = vadd.xlane.f32.xlu0 %v1710
    %v1712 = vpop.xlane.xlu0 %1711
    %v1713 = vsel %vm556, %v1641, 0.0
    %1714 = vadd.xlane.f32.xlu0 %v1713
    %v1715 = vpop.xlane.xlu0 %1714
    %v1716 = vsel %vm556, %v1643, 0.0
    %1717 = vadd.xlane.f32.xlu0 %v1716
    %v1718 = vpop.xlane.xlu0 %1717
    %v1719 = vsel %vm556, %v1645, 0.0
    %1720 = vadd.xlane.f32.xlu0 %v1719
    %v1721 = vpop.xlane.xlu0 %1720
    %v1722 = vsel %vm556, %v1647, 0.0
    %1723 = vadd.xlane.f32.xlu0 %v1722
    %v1724 = vpop.xlane.xlu0 %1723
    %v1725 = vsel %vm556, %v1649, 0.0
    %1726 = vadd.xlane.f32.xlu0 %v1725
    %v1727 = vpop.xlane.xlu0 %1726
    %v1728 = vsel %vm556, %v1651, 0.0
    %1729 = vadd.xlane.f32.xlu0 %v1728
    %v1730 = vpop.xlane.xlu0 %1729
    %v1731 = vsel %vm556, %v1653, 0.0
    %1732 = vadd.xlane.f32.xlu0 %v1731
    %v1733 = vpop.xlane.xlu0 %1732
    %v1734 = vsel %vm556, %v1655, 0.0
    %1735 = vadd.xlane.f32.xlu0 %v1734
    %v1736 = vpop.xlane.xlu0 %1735
    %v1737 = vsel %vm556, %v1657, 0.0
    %1738 = vadd.xlane.f32.xlu0 %v1737
    %v1739 = vpop.xlane.xlu0 %1738
    %v1740 = vsel %vm556, %v1659, 0.0
    %1741 = vadd.xlane.f32.xlu0 %v1740
    %v1742 = vpop.xlane.xlu0 %1741
    %v1743 = vsel %vm556, %v1661, 0.0
    %1744 = vadd.xlane.f32.xlu0 %v1743
    %v1745 = vpop.xlane.xlu0 %1744
    %v1746 = vsel %vm556, %v1663, 0.0
    %1747 = vadd.xlane.f32.xlu0 %v1746
    %v1748 = vpop.xlane.xlu0 %1747
    %v1749 = vsel %vm556, %v1665, 0.0
    %1750 = vadd.xlane.f32.xlu0 %v1749
    %v1751 = vpop.xlane.xlu0 %1750
    %v1752 = vsel %vm556, %v1667, 0.0
    %1753 = vadd.xlane.f32.xlu0 %v1752
    %v1754 = vpop.xlane.xlu0 %1753
    %v1755 = vsel %vm556, %v1669, 0.0
    %1756 = vadd.xlane.f32.xlu0 %v1755
    %v1757 = vpop.xlane.xlu0 %1756
    %v1758 = vsel %vm556, %v1671, 0.0
    %1759 = vadd.xlane.f32.xlu0 %v1758
    %v1760 = vpop.xlane.xlu0 %1759
    %v1761 = vsel %vm556, %v1673, 0.0
    %1762 = vadd.xlane.f32.xlu0 %v1761
    %v1763 = vpop.xlane.xlu0 %1762
    %v1764 = vsel %vm556, %v1675, 0.0
    %1765 = vadd.xlane.f32.xlu0 %v1764
    %v1766 = vpop.xlane.xlu0 %1765
    %v1767 = vsel %vm556, %v1677, 0.0
    %1768 = vadd.xlane.f32.xlu0 %v1767
    %v1769 = vpop.xlane.xlu0 %1768
    %v1770 = vsel %vm556, %v1679, 0.0
    %1771 = vadd.xlane.f32.xlu0 %v1770
    %v1772 = vpop.xlane.xlu0 %1771
    %v1773 = vsel %vm556, %v1681, 0.0
    %1774 = vadd.xlane.f32.xlu0 %v1773
    %v1775 = vpop.xlane.xlu0 %1774
    %v1776 = vsel %vm556, %v1683, 0.0
    %1777 = vadd.xlane.f32.xlu0 %v1776
    %v1778 = vpop.xlane.xlu0 %1777
    %v1779 = vsel %vm556, %v1685, 0.0
    %1780 = vadd.xlane.f32.xlu0 %v1779
    %v1781 = vpop.xlane.xlu0 %1780
    %v1782 = vrcp.pop %v1688
    %v1783 = vmul.f32 %v1623, %v1782
    %v1784 = vrcp.pop %v1691
    %v1785 = vmul.f32 %v1625, %v1784
    %v1786 = vrcp.pop %v1694
    %v1787 = vmul.f32 %v1627, %v1786
    %v1788 = vrcp.pop %v1697
    %v1789 = vmul.f32 %v1629, %v1788
    %v1790 = vrcp.pop %v1700
    %v1791 = vmul.f32 %v1631, %v1790
    %v1792 = vrcp.pop %v1703
    %v1793 = vmul.f32 %v1633, %v1792
    %v1794 = vrcp.pop %v1706
    %v1795 = vmul.f32 %v1635, %v1794
    %v1796 = vrcp.pop %v1709
    %v1797 = vmul.f32 %v1637, %v1796
    %v1798 = vrcp.pop %v1712
    %v1799 = vmul.f32 %v1639, %v1798
    %v1800 = vrcp.pop %v1715
    %v1801 = vmul.f32 %v1641, %v1800
    %v1802 = vrcp.pop %v1718
    %v1803 = vmul.f32 %v1643, %v1802
    %v1804 = vrcp.pop %v1721
    %v1805 = vmul.f32 %v1645, %v1804
    %v1806 = vrcp.pop %v1724
    %v1807 = vmul.f32 %v1647, %v1806
    %v1808 = vrcp.pop %v1727
    %v1809 = vmul.f32 %v1649, %v1808
    %v1810 = vrcp.pop %v1730
    %v1811 = vmul.f32 %v1651, %v1810
    %v1812 = vrcp.pop %v1733
    %v1813 = vmul.f32 %v1653, %v1812
    %v1814 = vrcp.pop %v1736
    %v1815 = vmul.f32 %v1655, %v1814
    %v1816 = vrcp.pop %v1739
    %v1817 = vmul.f32 %v1657, %v1816
    %v1818 = vrcp.pop %v1742
    %v1819 = vmul.f32 %v1659, %v1818
    %v1820 = vrcp.pop %v1745
    %v1821 = vmul.f32 %v1661, %v1820
    %v1822 = vrcp.pop %v1748
    %v1823 = vmul.f32 %v1663, %v1822
    %v1824 = vrcp.pop %v1751
    %v1825 = vmul.f32 %v1665, %v1824
    %v1826 = vrcp.pop %v1754
    %v1827 = vmul.f32 %v1667, %v1826
    %v1828 = vrcp.pop %v1757
    %v1829 = vmul.f32 %v1669, %v1828
    %v1830 = vrcp.pop %v1760
    %v1831 = vmul.f32 %v1671, %v1830
    %v1832 = vrcp.pop %v1763
    %v1833 = vmul.f32 %v1673, %v1832
    %v1834 = vrcp.pop %v1766
    %v1835 = vmul.f32 %v1675, %v1834
    %v1836 = vrcp.pop %v1769
    %v1837 = vmul.f32 %v1677, %v1836
    %v1838 = vrcp.pop %v1772
    %v1839 = vmul.f32 %v1679, %v1838
    %v1840 = vrcp.pop %v1775
    %v1841 = vmul.f32 %v1681, %v1840
    %v1842 = vrcp.pop %v1778
    %v1843 = vmul.f32 %v1683, %v1842
    %v1844 = vrcp.pop %v1781
    %v1845 = vmul.f32 %v1685, %v1844
    %v1846 = vpack.c.bf16 %v1785, %v1783
    %v1847 = vpack.c.bf16 %v1789, %v1787
    %v1848 = vpack.c.bf16 %v1793, %v1791
    %v1849 = vpack.c.bf16 %v1797, %v1795
    %v1850 = vpack.c.bf16 %v1801, %v1799
    %v1851 = vpack.c.bf16 %v1805, %v1803
    %v1852 = vpack.c.bf16 %v1809, %v1807
    %v1853 = vpack.c.bf16 %v1813, %v1811
    %v1854 = vpack.c.bf16 %v1817, %v1815
    %v1855 = vpack.c.bf16 %v1821, %v1819
    %v1856 = vpack.c.bf16 %v1825, %v1823
    %v1857 = vpack.c.bf16 %v1829, %v1827
    %v1858 = vpack.c.bf16 %v1833, %v1831
    %v1859 = vpack.c.bf16 %v1837, %v1835
    %v1860 = vpack.c.bf16 %v1841, %v1839
    %v1861 = vpack.c.bf16 %v1845, %v1843
    %v1863 = vsel %vm556, %v1246, 0
    %v1866 = vsel %vm556, %v1247, 0
    %v1869 = vsel %vm556, %v1846, 0
    %v1872 = vsel %vm556, %v1847, 0
    %v1875 = vsel %vm556, %v1848, 0
    %v1878 = vsel %vm556, %v1849, 0
    %v1881 = vsel %vm556, %v1850, 0
    %v1884 = vsel %vm556, %v1851, 0
    %v1887 = vsel %vm556, %v1852, 0
    %v1890 = vsel %vm556, %v1853, 0
    %v1893 = vsel %vm556, %v1854, 0
    %v1896 = vsel %vm556, %v1855, 0
    %v1899 = vsel %vm556, %v1856, 0
    %v1902 = vsel %vm556, %v1857, 0
    %v1905 = vsel %vm556, %v1858, 0
    %v1908 = vsel %vm556, %v1859, 0
    %v1911 = vsel %vm556, %v1860, 0
    %v1914 = vsel %vm556, %v1861, 0
    %1916 = vmatprep.subr.bf16.mxu0 0
    %1917 = vmatpush1.bf16.xpose.msra.mxu0 %v1890
    %1918 = vmatprep.subr.bf16.mxu0 0
    %1919 = vmatpush1.bf16.xpose.msra.mxu0 %v1887
    %1920 = vmatprep.subr.bf16.mxu0 0
    %1921 = vmatpush1.bf16.xpose.msra.mxu0 %v1884
    %1922 = vmatprep.subr.bf16.mxu0 0
    %1923 = vmatpush1.bf16.xpose.msra.mxu0 %v1881
    %1924 = vmatprep.subr.bf16.mxu0 0
    %1925 = vmatpush1.bf16.xpose.msra.mxu0 %v1878
    %1926 = vmatprep.subr.bf16.mxu0 0
    %1927 = vmatpush1.bf16.xpose.msra.mxu0 %v1875
    %1928 = vmatprep.subr.bf16.mxu0 0
    %1929 = vmatpush1.bf16.xpose.msra.mxu0 %v1872
    %1930 = vmatprep.subr.bf16.mxu0 0
    %1931 = vmatpush1.bf16.xpose.msra.mxu0 %v1869
    %1932 = vmatprep.subr.bf16.mxu0 0
    %1933 = vmatpush2.bf16.xpose.msra.mxu0 %v1914
    %1934 = vmatprep.subr.bf16.mxu0 0
    %1935 = vmatpush2.bf16.xpose.msra.mxu0 %v1911
    %1936 = vmatprep.subr.bf16.mxu0 0
    %1937 = vmatpush2.bf16.xpose.msra.mxu0 %v1908
    %1938 = vmatprep.subr.bf16.mxu0 0
    %1939 = vmatpush2.bf16.xpose.msra.mxu0 %v1905
    %1940 = vmatprep.subr.bf16.mxu0 0
    %1941 = vmatpush2.bf16.xpose.msra.mxu0 %v1902
    %1942 = vmatprep.subr.bf16.mxu0 0
    %1943 = vmatpush2.bf16.xpose.msra.mxu0 %v1899
    %1944 = vmatprep.subr.bf16.mxu0 0
    %1945 = vmatpush2.bf16.xpose.msra.mxu0 %v1896
    %1946 = vmatprep.subr.bf16.mxu0 0
    %1947 = vmatpush2.bf16.xpose.msra.mxu0 %v1893
    %1948 = vmatprep.mubr.bf16.mxu0 0
    %1949 = vmatmul.mubr.bf16.gmra.mxu0 %v1863
    %v1950 = vpop.f32.mrf.mxu0
    %v1951 = vadd.f32 0.0, %v1950
    %v1952 = vpop.f32.mrf.mxu0
    %v1953 = vadd.f32 0.0, %v1952
    %v1954 = vpop.f32.mrf.mxu0
    %v1955 = vadd.f32 0.0, %v1954
    %v1956 = vpop.f32.mrf.mxu0
    %v1957 = vadd.f32 0.0, %v1956
    %1958 = vmatprep.mubr.bf16.mxu0 0
    %1959 = vmatmul.mubr.bf16.gmra.mxu0 %v1866
    %v1960 = vpop.f32.mrf.mxu0
    %v1961 = vadd.f32 0.0, %v1960
    %v1962 = vpop.f32.mrf.mxu0
    %v1963 = vadd.f32 0.0, %v1962
    %v1964 = vpop.f32.mrf.mxu0
    %v1965 = vadd.f32 0.0, %v1964
    %v1966 = vpop.f32.mrf.mxu0
    %v1967 = vadd.f32 0.0, %v1966
    %1968 = vdwg.mxu0
    %v1969 = vmul.f32 %v1032, %v1951
    %v1970 = vmul.f32 %v1032, %v1953
    %v1971 = vmul.f32 %v1032, %v1955
    %v1972 = vmul.f32 %v1032, %v1957
    %v1973 = vmul.f32 %v1032, %v1961
    %v1974 = vmul.f32 %v1032, %v1963
    %v1975 = vmul.f32 %v1032, %v1965
    %v1976 = vmul.f32 %v1032, %v1967
    %v1977 = vadd.f32 %v1058, %v1969
    %v1978 = vadd.f32 %v1059, %v1970
    %v1979 = vadd.f32 %v1060, %v1971
    %v1980 = vadd.f32 %v1061, %v1972
    %v1981 = vadd.f32 %v1062, %v1973
    %v1982 = vadd.f32 %v1063, %v1974
    %v1983 = vadd.f32 %v1064, %v1975
    %v1984 = vadd.f32 %v1065, %v1976
    %s1985 = scalar_lea.vmem [#allocation9], 64
    %1986 = vst [vmem:[%s1985] sm:$0xff] %v1977
    %1987 = vst [vmem:[%s1985 + $0x8] sm:$0xff] %v1978
    %1988 = vst [vmem:[%s1985 + $0x10] sm:$0xff] %v1979
    %1989 = vst [vmem:[%s1985 + $0x18] sm:$0xff] %v1980
    %1990 = vst [vmem:[%s1985 + $0x20] sm:$0xff] %v1981
    %1991 = vst [vmem:[%s1985 + $0x28] sm:$0xff] %v1982
    %1992 = vst [vmem:[%s1985 + $0x30] sm:$0xff] %v1983
    %1993 = vst [vmem:[%s1985 + $0x38] sm:$0xff] %v1984
    // Predicated region
    $region34: #{tpu_custom_call.1} parent=1 // pred_check
      _
    $region35: #{tpu_custom_call.1} parent=1 // pred_check_branch
      %1995 = sbr.rel (0) target = $region37
    $region36: #{tpu_custom_call.1} parent=1 // pred_region
      %s1997 = ssub.s32 2048, 2048
      %1998 = vsyncadd [#allocation5], %s1997
      %s1999 = sshll.u32 [#allocation9], 4
      %s2000 = int_to_ptr.vmem [resolvable:$true] %s1999
      %2005 = dma.vmem_to_hbm [thread:$0]  %s2000, 2048, %s5, [#allocation5], 256, 256, 16
    $region37: #{tpu_custom_call.1} parent=1 // pred_fallthru
      _
    // Predicated region
    $region38: #{tpu_custom_call.1} parent=1 // pred_check
      _
    $region39: #{tpu_custom_call.1} parent=1 // pred_check_branch
      %2007 = sbr.rel (0) target = $region41
    $region40: #{tpu_custom_call.1} parent=1 // pred_region
      %2008 = dma.done [#allocation5], 2048
    $region41: #{tpu_custom_call.1} parent=1 // pred_fallthru
      _
    %2009 = vsyncpa [#allocation4], 1
    %2010 = vsyncpa [#allocation7], 1
    %2011 = vsyncpa [#allocation5], 1

</llo_original>
